<compile_context>
chip_gen: v7x
topology: tpu7x:2x2x1
jax: 0.10.0
libtpu: 0.0.40
codegen_flags: <defaults>
</compile_context>

<pallas_src>
import math
import numpy as np
import jax
import jax.numpy as jnp
from jax import lax
from jax.experimental import pallas as pl
from jax.experimental.pallas import tpu as pltpu


# ---------------------------------------------------------------------------
# Fused kernel: embed-gather + conv(taps) + ReLU + per-class attention + FC
# ---------------------------------------------------------------------------
def make_fused_kernel(Ks, B, L, E, V, F, C, O):
    NB = len(Ks)
    Kmax = max(Ks)
    BL = B * L
    Tp = NB * L          # branch-stacked (padded) position count, 8-aligned blocks
    CO = C * O

    def kernel(tok_ref, embed_ref, wc_ref, bc_ref, attn_ref, mask_ref,
               fcw2_ref, fcb_ref, sel_ref, y_ref):
        # tok_ref : (B*L, 1) int32        embed_ref: (V, E) f32
        # wc_ref  : (Kmax*E, NB*F) bf16   bc_ref   : (1, NB*F) f32
        # attn_ref: (F, C) f32 (pre-scaled by 1/sqrt(F))
        # mask_ref: (B, NB*L, 1) f32      fcw2_ref : (F, C*O) f32
        # fcb_ref : (1, C*O) f32          sel_ref  : (C, C*O) f32 0/1 diag blocks
        # y_ref   : (B, C*O) f32

        # --- embedding gather: one-hot (B*L, V) @ (V, E) on the MXU (exact) ----
        iota_v = lax.broadcasted_iota(jnp.int32, (BL, V), 1)
        onehot = (iota_v == tok_ref[...]).astype(jnp.float32)
        x = jnp.dot(onehot, embed_ref[...],
                    preferred_element_type=jnp.float32)              # (B*L, E)

        # --- conv: Kmax accumulating shifted matmuls, bf16 operands / f32 acc ---
        # Tap rows that cross a batch boundary (or read the zero pad) only feed
        # output rows that the mask sets to -inf, so their values never matter.
        x_ext = jnp.concatenate([x, jnp.zeros((8, E), jnp.float32)], axis=0)
        wc = wc_ref[...]                                             # bf16
        r = jnp.zeros((BL, NB * F), jnp.float32)
        for k in range(Kmax):
            xk = x_ext[k:k + BL, :].astype(jnp.bfloat16)
            r = r + jnp.dot(xk, wc[k * E:(k + 1) * E, :],
                            preferred_element_type=jnp.float32)
        act = jnp.maximum(r + bc_ref[...], 0.0)                      # (B*L, NB*F)

        # --- per-batch attention + per-class FC (B=2, unrolled) ----------------
        rows = []
        for b in range(B):
            act_b = act[b * L:(b + 1) * L, :]                        # aligned rows
            # Branch blocks stack at 8-aligned sublane offsets 0/16/32 -> (T', F)
            out2d = jnp.concatenate(
                [act_b[:, i * F:(i + 1) * F] for i in range(NB)], axis=0)

            scores = jnp.dot(out2d, attn_ref[...],
                             preferred_element_type=jnp.float32)     # (T', C)
            scores = scores + mask_ref[b]                            # (T',1) bcast
            # max/sum guards only change behavior in the degenerate all-masked
            # case (PyTorch would produce NaN there).
            m = jnp.maximum(jnp.max(scores, axis=0, keepdims=True), -1e30)
            p = jnp.exp(scores - m)
            denom = jnp.maximum(jnp.sum(p, axis=0, keepdims=True), 1e-30)
            a = p * pl.reciprocal(denom, approx=True)                # (T', C)

            # h[c, f] = sum_t a[t, c] * out2d[t, f]  (Dropout = eval-mode identity)
            h = lax.dot_general(a, out2d, (((0,), (0,)), ((), ())),
                                preferred_element_type=jnp.float32)  # (C, F)
            g = jnp.dot(h, fcw2_ref[...],
                        preferred_element_type=jnp.float32)          # (C, C*O)
            rows.append(jnp.sum(g * sel_ref[...], axis=0, keepdims=True)
                        + fcb_ref[...])                              # (1, C*O)

        y_ref[...] = jnp.concatenate(rows, axis=0)                   # (B, C*O)

    return kernel, Tp


def cnn_attn_forward(tokens, mask_pad, params, Ks):
    B, L = tokens.shape
    embed = params["embed"]
    V, E = embed.shape
    wc, bc = params["wc"], params["bc"]               # (Kmax*E, NB*F) bf16, (1, NB*F)
    attn_w = params["attn_w_scaled"]                  # (F, C), pre-scaled offline
    fcw2, fcb = params["fcw2"], params["fcb"]         # (F, C*O), (1, C*O)
    sel = params["sel"]                               # (C, C*O) 0/1 diag blocks
    F, C = attn_w.shape
    CO = fcw2.shape[1]
    O = CO // C
    NB, Kmax = len(Ks), max(Ks)
    BL = B * L

    kernel, Tp = make_fused_kernel(Ks, B, L, E, V, F, C, O)

    # Only wrapper glue left: a trivial reshape of the int32 token ids.
    tok_col = tokens.reshape(BL, 1).astype(jnp.int32)

    flops = (2 * BL * V * E + 2 * Kmax * BL * E * NB * F
             + 2 * B * (Tp * F * C + C * Tp * F + C * F * CO))
    bytes_acc = (4 * (tok_col.size + embed.size + bc.size + attn_w.size
                      + mask_pad.size + fcw2.size + fcb.size + sel.size + B * CO)
                 + 2 * wc.size)

    y_flat = pl.pallas_call(
        kernel,
        out_shape=jax.ShapeDtypeStruct((B, CO), jnp.float32),
        grid=(1,),
        in_specs=[
            pl.BlockSpec((BL, 1), lambda i: (0, 0)),
            pl.BlockSpec((V, E), lambda i: (0, 0)),
            pl.BlockSpec((Kmax * E, NB * F), lambda i: (0, 0)),
            pl.BlockSpec((1, NB * F), lambda i: (0, 0)),
            pl.BlockSpec((F, C), lambda i: (0, 0)),
            pl.BlockSpec((B, Tp, 1), lambda i: (0, 0, 0)),
            pl.BlockSpec((F, CO), lambda i: (0, 0)),
            pl.BlockSpec((1, CO), lambda i: (0, 0)),
            pl.BlockSpec((C, CO), lambda i: (0, 0)),
        ],
        out_specs=pl.BlockSpec((B, CO), lambda i: (0, 0)),
        compiler_params=pltpu.CompilerParams(
            dimension_semantics=("arbitrary",)),
        cost_estimate=pl.CostEstimate(flops=flops,
                                      transcendentals=B * Tp * C,
                                      bytes_accessed=bytes_acc),
    )(tok_col, embed, wc, bc, attn_w, mask_pad, fcw2, fcb, sel)
    return y_flat.reshape(B, C, O)


# ---------------------------------------------------------------------------
# Masks (exact PyTorch semantics, incl. its quirky indexing) & JAX reference
# ---------------------------------------------------------------------------
def generate_pad_mask(batch_size, max_len, caption_length, Ks):
    total_len = max_len * len(Ks) - sum(K - 1 for K in Ks)
    mask = np.full((batch_size, total_len), -np.inf, dtype=np.float32)
    for ind1, cap_len in enumerate(caption_length):
        for ind2, K in enumerate(Ks):
            mask[ind1, max_len * ind2: cap_len - (K - 1)] = 0.0
    return mask


def pad_mask_to_branch_blocks(mask_T, max_len, Ks):
    # Re-layout the (B, T) mask into the kernel's branch-stacked layout
    # (B, NB*max_len, 1): branch i occupies rows [i*L, (i+1)*L); rows beyond that
    # branch's valid conv length stay -inf (they hold garbage conv outputs).
    B = mask_T.shape[0]
    NB = len(Ks)
    out = np.full((B, NB * max_len, 1), -np.inf, dtype=np.float32)
    off = 0
    for i, K in enumerate(Ks):
        L_out = max_len - K + 1
        out[:, i * max_len:i * max_len + L_out, 0] = mask_T[:, off:off + L_out]
        off += L_out
    return out


def reference_forward(tokens, mask2d, params, Ks):
    # Pure-JAX reference mirroring the PyTorch forward (dropout = identity).
    x = params["embed"][tokens]                                    # (B, L, E)
    outs = []
    for (W_fek, b), K in zip(params["convs_torch"], Ks):
        L_out = x.shape[1] - K + 1
        cols = jnp.stack([x[:, k:k + L_out, :] for k in range(K)], axis=-1)
        o = jnp.einsum("blek,fek->blf", cols, W_fek) + b[None, None, :]
        outs.append(jax.nn.relu(o))
    output = jnp.concatenate(outs, axis=1)                         # (B, T, F)
    F = output.shape[-1]
    scores = jnp.einsum("btf,fc->btc", output, params["attn_w"]) / math.sqrt(F)
    scores = scores + mask2d[:, :, None]
    a = jax.nn.softmax(scores, axis=1)
    h = jnp.einsum("btf,btc->bcf", output, a)
    y = jnp.einsum("bcf,cof->bco", h, params["fc_w"]) + params["fc_b"][None]
    return y


if __name__ == "__main__":
    # Small, deterministic configuration consistent with the module.
    B, max_len = 2, 16
    vocab, emb_dim = 50, 16
    filters = 32
    kernels = [3, 4, 5]
    num_classes = 14
    num_out = 2
    caption_length = [12, 9]

    key = jax.random.PRNGKey(0)
    ks = jax.random.split(key, 4 + 2 * len(kernels))

    embed_w = 0.1 * jax.random.normal(ks[0], (vocab, emb_dim), jnp.float32)
    attn_w = 0.1 * jax.random.normal(ks[1], (filters, num_classes), jnp.float32)
    fc_w = 0.1 * jax.random.normal(ks[2], (num_classes, num_out, filters), jnp.float32)
    fc_b = 0.1 * jax.random.normal(ks[3], (num_classes, num_out), jnp.float32)

    convs_torch = []
    for i, K in enumerate(kernels):
        W_fek = 0.1 * jax.random.normal(ks[4 + 2 * i], (filters, emb_dim, K), jnp.float32)
        b_f = 0.1 * jax.random.normal(ks[5 + 2 * i], (filters,), jnp.float32)
        convs_torch.append((W_fek, b_f))

    # ---- offline parameter packing (NumPy, outside jit) ----------------------
    Kmax, NB = max(kernels), len(kernels)
    # All conv branches in one tap-stacked weight (Kmax*E, NB*F); zero tap padding.
    wc_np = np.zeros((Kmax * emb_dim, NB * filters), np.float32)
    bc_np = np.zeros((1, NB * filters), np.float32)
    for i, (W_fek, b_f) in enumerate(convs_torch):
        K = W_fek.shape[-1]
        w_np = np.asarray(W_fek)                     # (F, E, K)
        for k in range(K):
            wc_np[k * emb_dim:(k + 1) * emb_dim,
                  i * filters:(i + 1) * filters] = w_np[:, :, k].T
        bc_np[0, i * filters:(i + 1) * filters] = np.asarray(b_f)

    # Per-class FC packed as W2 (F, C*O) with W2[f, c*O+o] = fc_w[c, o, f].
    fcw2_np = np.transpose(np.asarray(fc_w), (2, 0, 1)).reshape(
        filters, num_classes * num_out)
    fcb_np = np.asarray(fc_b).reshape(1, num_classes * num_out)

    # Diagonal-block selector for the per-class FC gather (constant operand).
    sel_np = np.zeros((num_classes, num_classes * num_out), np.float32)
    for c in range(num_classes):
        sel_np[c, c * num_out:(c + 1) * num_out] = 1.0

    params = {
        "embed": embed_w,
        "wc": jnp.asarray(wc_np).astype(jnp.bfloat16),     # bf16 MXU operand
        "bc": jnp.asarray(bc_np),
        "attn_w_scaled": attn_w / math.sqrt(filters),       # 1/sqrt(F) folded in
        "fcw2": jnp.asarray(fcw2_np),
        "fcb": jnp.asarray(fcb_np),
        "sel": jnp.asarray(sel_np),
        # reference-only copies (PyTorch layout):
        "convs_torch": convs_torch,
        "attn_w": attn_w,
        "fc_w": fc_w,
        "fc_b": fc_b,
    }

    tokens = jax.random.randint(jax.random.PRNGKey(1), (B, max_len), 0, vocab)
    mask_T_np = generate_pad_mask(B, max_len, caption_length, kernels)   # (B, T)
    mask2d = jnp.asarray(mask_T_np)                                      # reference
    mask_pad = jnp.asarray(
        pad_mask_to_branch_blocks(mask_T_np, max_len, kernels))          # (B, NB*L, 1)

    # TODO(synk): nn.Dropout(p=0.5) is stochastic in train mode; implemented as
    # eval-mode identity here.
    y = cnn_attn_forward(tokens, mask_pad, params, kernels)
    y = jax.block_until_ready(y)

    y_ref = jax.block_until_ready(reference_forward(tokens, mask2d, params, kernels))
    assert y.shape == (B, num_classes, num_out)
    np.testing.assert_allclose(np.asarray(y), np.asarray(y_ref), rtol=2e-2, atol=2e-3)

    print("KERNEL_OK")
</pallas_src>

<mosaic_0001>
module attributes {stable_mosaic.version = 11 : i64} {
  func.func @kernel(%arg0: i32, %arg1: memref<32x1xi32, #tpu.memory_space<vmem>>, %arg2: memref<50x16xf32, #tpu.memory_space<vmem>>, %arg3: memref<80x96xbf16, #tpu.memory_space<vmem>>, %arg4: memref<1x96xf32, #tpu.memory_space<vmem>>, %arg5: memref<32x14xf32, #tpu.memory_space<vmem>>, %arg6: memref<2x48x1xf32, #tpu.memory_space<vmem>>, %arg7: memref<32x28xf32, #tpu.memory_space<vmem>>, %arg8: memref<1x28xf32, #tpu.memory_space<vmem>>, %arg9: memref<14x28xf32, #tpu.memory_space<vmem>>, %arg10: memref<2x28xf32, #tpu.memory_space<vmem>>) attributes {dimension_semantics = [#tpu.dimension_semantics<arbitrary>], iteration_bounds = array<i64: 1>, scalar_prefetch = 0 : i64, scratch_operands = 0 : i64, tpu.core_type = #tpu.core_type<tc>, window_params = [{pipeline_mode = #tpu.pipeline_mode<synchronous>, transform_indices = @transform_0, window_bounds = array<i64: 32, 1>}, {pipeline_mode = #tpu.pipeline_mode<synchronous>, transform_indices = @transform_1, window_bounds = array<i64: 50, 16>}, {pipeline_mode = #tpu.pipeline_mode<synchronous>, transform_indices = @transform_2, window_bounds = array<i64: 80, 96>}, {pipeline_mode = #tpu.pipeline_mode<synchronous>, transform_indices = @transform_3, window_bounds = array<i64: 1, 96>}, {pipeline_mode = #tpu.pipeline_mode<synchronous>, transform_indices = @transform_4, window_bounds = array<i64: 32, 14>}, {pipeline_mode = #tpu.pipeline_mode<synchronous>, transform_indices = @transform_5, window_bounds = array<i64: 2, 48, 1>}, {pipeline_mode = #tpu.pipeline_mode<synchronous>, transform_indices = @transform_6, window_bounds = array<i64: 32, 28>}, {pipeline_mode = #tpu.pipeline_mode<synchronous>, transform_indices = @transform_7, window_bounds = array<i64: 1, 28>}, {pipeline_mode = #tpu.pipeline_mode<synchronous>, transform_indices = @transform_8, window_bounds = array<i64: 14, 28>}, {pipeline_mode = #tpu.pipeline_mode<synchronous>, transform_indices = @transform_9, window_bounds = array<i64: 2, 28>}]} {
    %0 = tpu.iota {dimensions = array<i32: 1>} : vector<32x50xi32>
    %c0 = arith.constant 0 : index
    %c0_0 = arith.constant 0 : index
    %1 = vector.load %arg1[%c0, %c0_0] : memref<32x1xi32, #tpu.memory_space<vmem>>, vector<32x1xi32>
    %2 = vector.broadcast %1 : vector<32x1xi32> to vector<32x50xi32>
    %3 = arith.cmpi eq, %0, %2 : vector<32x50xi32>
    %4 = arith.extui %3 : vector<32x50xi1> to vector<32x50xi32>
    %5 = arith.sitofp %4 : vector<32x50xi32> to vector<32x50xf32>
    %c0_1 = arith.constant 0 : index
    %c0_2 = arith.constant 0 : index
    %6 = vector.load %arg2[%c0_1, %c0_2] : memref<50x16xf32, #tpu.memory_space<vmem>>, vector<50x16xf32>
    %cst = arith.constant dense<0.000000e+00> : vector<32x16xf32>
    %7 = tpu.matmul %5, %6, %cst {dimension_numbers = #tpu.dot_dimension_numbers<[1], [0], [0], [1], [0, 0, 1, 1], [], []>} : vector<32x50xf32>, vector<50x16xf32>, vector<32x16xf32> -> vector<32x16xf32>
    %cst_3 = arith.constant 0.000000e+00 : f32
    %8 = vector.broadcast %cst_3 : f32 to vector<8x16xf32>
    %9 = tpu.concatenate %7, %8 in 0 : vector<32x16xf32>, vector<8x16xf32> -> vector<40x16xf32>
    %c0_4 = arith.constant 0 : index
    %c0_5 = arith.constant 0 : index
    %10 = vector.load %arg3[%c0_4, %c0_5] : memref<80x96xbf16, #tpu.memory_space<vmem>>, vector<80x96xbf16>
    %cst_6 = arith.constant 0.000000e+00 : f32
    %11 = vector.broadcast %cst_6 : f32 to vector<32x96xf32>
    %12 = vector.extract_strided_slice %9 {offsets = [0, 0], sizes = [32, 16], strides = [1, 1]} : vector<40x16xf32> to vector<32x16xf32>
    %13 = arith.truncf %12 : vector<32x16xf32> to vector<32x16xbf16>
    %14 = vector.extract_strided_slice %10 {offsets = [0, 0], sizes = [16, 96], strides = [1, 1]} : vector<80x96xbf16> to vector<16x96xbf16>
    %cst_7 = arith.constant dense<0.000000e+00> : vector<32x96xf32>
    %15 = tpu.matmul %13, %14, %cst_7 {dimension_numbers = #tpu.dot_dimension_numbers<[1], [0], [0], [1], [0, 0, 1, 1], [], []>} : vector<32x16xbf16>, vector<16x96xbf16>, vector<32x96xf32> -> vector<32x96xf32>
    %16 = arith.addf %11, %15 : vector<32x96xf32>
    %17 = vector.extract_strided_slice %9 {offsets = [1, 0], sizes = [32, 16], strides = [1, 1]} : vector<40x16xf32> to vector<32x16xf32>
    %18 = arith.truncf %17 : vector<32x16xf32> to vector<32x16xbf16>
    %19 = vector.extract_strided_slice %10 {offsets = [16, 0], sizes = [16, 96], strides = [1, 1]} : vector<80x96xbf16> to vector<16x96xbf16>
    %cst_8 = arith.constant dense<0.000000e+00> : vector<32x96xf32>
    %20 = tpu.matmul %18, %19, %cst_8 {dimension_numbers = #tpu.dot_dimension_numbers<[1], [0], [0], [1], [0, 0, 1, 1], [], []>} : vector<32x16xbf16>, vector<16x96xbf16>, vector<32x96xf32> -> vector<32x96xf32>
    %21 = arith.addf %16, %20 : vector<32x96xf32>
    %22 = vector.extract_strided_slice %9 {offsets = [2, 0], sizes = [32, 16], strides = [1, 1]} : vector<40x16xf32> to vector<32x16xf32>
    %23 = arith.truncf %22 : vector<32x16xf32> to vector<32x16xbf16>
    %24 = vector.extract_strided_slice %10 {offsets = [32, 0], sizes = [16, 96], strides = [1, 1]} : vector<80x96xbf16> to vector<16x96xbf16>
    %cst_9 = arith.constant dense<0.000000e+00> : vector<32x96xf32>
    %25 = tpu.matmul %23, %24, %cst_9 {dimension_numbers = #tpu.dot_dimension_numbers<[1], [0], [0], [1], [0, 0, 1, 1], [], []>} : vector<32x16xbf16>, vector<16x96xbf16>, vector<32x96xf32> -> vector<32x96xf32>
    %26 = arith.addf %21, %25 : vector<32x96xf32>
    %27 = vector.extract_strided_slice %9 {offsets = [3, 0], sizes = [32, 16], strides = [1, 1]} : vector<40x16xf32> to vector<32x16xf32>
    %28 = arith.truncf %27 : vector<32x16xf32> to vector<32x16xbf16>
    %29 = vector.extract_strided_slice %10 {offsets = [48, 0], sizes = [16, 96], strides = [1, 1]} : vector<80x96xbf16> to vector<16x96xbf16>
    %cst_10 = arith.constant dense<0.000000e+00> : vector<32x96xf32>
    %30 = tpu.matmul %28, %29, %cst_10 {dimension_numbers = #tpu.dot_dimension_numbers<[1], [0], [0], [1], [0, 0, 1, 1], [], []>} : vector<32x16xbf16>, vector<16x96xbf16>, vector<32x96xf32> -> vector<32x96xf32>
    %31 = arith.addf %26, %30 : vector<32x96xf32>
    %32 = vector.extract_strided_slice %9 {offsets = [4, 0], sizes = [32, 16], strides = [1, 1]} : vector<40x16xf32> to vector<32x16xf32>
    %33 = arith.truncf %32 : vector<32x16xf32> to vector<32x16xbf16>
    %34 = vector.extract_strided_slice %10 {offsets = [64, 0], sizes = [16, 96], strides = [1, 1]} : vector<80x96xbf16> to vector<16x96xbf16>
    %cst_11 = arith.constant dense<0.000000e+00> : vector<32x96xf32>
    %35 = tpu.matmul %33, %34, %cst_11 {dimension_numbers = #tpu.dot_dimension_numbers<[1], [0], [0], [1], [0, 0, 1, 1], [], []>} : vector<32x16xbf16>, vector<16x96xbf16>, vector<32x96xf32> -> vector<32x96xf32>
    %36 = arith.addf %31, %35 : vector<32x96xf32>
    %c0_12 = arith.constant 0 : index
    %c0_13 = arith.constant 0 : index
    %37 = vector.load %arg4[%c0_12, %c0_13] : memref<1x96xf32, #tpu.memory_space<vmem>>, vector<1x96xf32>
    %38 = vector.broadcast %37 : vector<1x96xf32> to vector<32x96xf32>
    %39 = arith.addf %36, %38 : vector<32x96xf32>
    %cst_14 = arith.constant 0.000000e+00 : f32
    %40 = vector.broadcast %cst_14 : f32 to vector<32x96xf32>
    %41 = arith.maximumf %39, %40 : vector<32x96xf32>
    %42 = vector.extract_strided_slice %41 {offsets = [0, 0], sizes = [16, 96], strides = [1, 1]} : vector<32x96xf32> to vector<16x96xf32>
    %43 = vector.extract_strided_slice %42 {offsets = [0, 0], sizes = [16, 32], strides = [1, 1]} : vector<16x96xf32> to vector<16x32xf32>
    %44 = vector.extract_strided_slice %42 {offsets = [0, 32], sizes = [16, 32], strides = [1, 1]} : vector<16x96xf32> to vector<16x32xf32>
    %45 = vector.extract_strided_slice %42 {offsets = [0, 64], sizes = [16, 32], strides = [1, 1]} : vector<16x96xf32> to vector<16x32xf32>
    %46 = tpu.concatenate %43, %44, %45 in 0 : vector<16x32xf32>, vector<16x32xf32>, vector<16x32xf32> -> vector<48x32xf32>
    %c0_15 = arith.constant 0 : index
    %c0_16 = arith.constant 0 : index
    %47 = vector.load %arg5[%c0_15, %c0_16] : memref<32x14xf32, #tpu.memory_space<vmem>>, vector<32x14xf32>
    %cst_17 = arith.constant dense<0.000000e+00> : vector<48x14xf32>
    %48 = tpu.matmul %46, %47, %cst_17 {dimension_numbers = #tpu.dot_dimension_numbers<[1], [0], [0], [1], [0, 0, 1, 1], [], []>} : vector<48x32xf32>, vector<32x14xf32>, vector<48x14xf32> -> vector<48x14xf32>
    %c0_18 = arith.constant 0 : index
    %c0_19 = arith.constant 0 : index
    %c0_20 = arith.constant 0 : index
    %49 = vector.load %arg6[%c0_18, %c0_19, %c0_20] : memref<2x48x1xf32, #tpu.memory_space<vmem>>, vector<1x48x1xf32>
    %50 = vector.shape_cast %49 : vector<1x48x1xf32> to vector<48x1xf32>
    %51 = vector.broadcast %50 : vector<48x1xf32> to vector<48x14xf32>
    %52 = arith.addf %48, %51 : vector<48x14xf32>
    %cst_21 = arith.constant dense<0xFF800000> : vector<14xf32>
    %53 = vector.multi_reduction <maximumf>, %52, %cst_21 [0] : vector<48x14xf32> to vector<14xf32>
    %54 = vector.shape_cast %53 : vector<14xf32> to vector<1x14xf32>
    %cst_22 = arith.constant -1.000000e+30 : f32
    %55 = vector.broadcast %cst_22 : f32 to vector<1x14xf32>
    %56 = arith.maximumf %54, %55 : vector<1x14xf32>
    %57 = vector.broadcast %56 : vector<1x14xf32> to vector<48x14xf32>
    %58 = arith.subf %52, %57 : vector<48x14xf32>
    %59 = math.exp %58 : vector<48x14xf32>
    %cst_23 = arith.constant dense<0.000000e+00> : vector<14xf32>
    %60 = vector.multi_reduction <add>, %59, %cst_23 [0] : vector<48x14xf32> to vector<14xf32>
    %61 = vector.shape_cast %60 : vector<14xf32> to vector<1x14xf32>
    %cst_24 = arith.constant 1.000000e-30 : f32
    %62 = vector.broadcast %cst_24 : f32 to vector<1x14xf32>
    %63 = arith.maximumf %61, %62 : vector<1x14xf32>
    %64 = tpu.reciprocal %63 {approx = true} : vector<1x14xf32> -> vector<1x14xf32>
    %65 = vector.broadcast %64 : vector<1x14xf32> to vector<48x14xf32>
    %66 = arith.mulf %59, %65 : vector<48x14xf32>
    %cst_25 = arith.constant dense<0.000000e+00> : vector<14x32xf32>
    %67 = tpu.matmul %66, %46, %cst_25 {dimension_numbers = #tpu.dot_dimension_numbers<[0], [0], [1], [1], [0, 1, 1, 1], [], []>} : vector<48x14xf32>, vector<48x32xf32>, vector<14x32xf32> -> vector<14x32xf32>
    %c0_26 = arith.constant 0 : index
    %c0_27 = arith.constant 0 : index
    %68 = vector.load %arg7[%c0_26, %c0_27] : memref<32x28xf32, #tpu.memory_space<vmem>>, vector<32x28xf32>
    %cst_28 = arith.constant dense<0.000000e+00> : vector<14x28xf32>
    %69 = tpu.matmul %67, %68, %cst_28 {dimension_numbers = #tpu.dot_dimension_numbers<[1], [0], [0], [1], [0, 0, 1, 1], [], []>} : vector<14x32xf32>, vector<32x28xf32>, vector<14x28xf32> -> vector<14x28xf32>
    %c0_29 = arith.constant 0 : index
    %c0_30 = arith.constant 0 : index
    %70 = vector.load %arg9[%c0_29, %c0_30] : memref<14x28xf32, #tpu.memory_space<vmem>>, vector<14x28xf32>
    %71 = arith.mulf %69, %70 : vector<14x28xf32>
    %cst_31 = arith.constant dense<0.000000e+00> : vector<28xf32>
    %72 = vector.multi_reduction <add>, %71, %cst_31 [0] : vector<14x28xf32> to vector<28xf32>
    %73 = vector.shape_cast %72 : vector<28xf32> to vector<1x28xf32>
    %c0_32 = arith.constant 0 : index
    %c0_33 = arith.constant 0 : index
    %74 = vector.load %arg8[%c0_32, %c0_33] : memref<1x28xf32, #tpu.memory_space<vmem>>, vector<1x28xf32>
    %75 = arith.addf %73, %74 : vector<1x28xf32>
    %76 = vector.extract_strided_slice %41 {offsets = [16, 0], sizes = [16, 96], strides = [1, 1]} : vector<32x96xf32> to vector<16x96xf32>
    %77 = vector.extract_strided_slice %76 {offsets = [0, 0], sizes = [16, 32], strides = [1, 1]} : vector<16x96xf32> to vector<16x32xf32>
    %78 = vector.extract_strided_slice %76 {offsets = [0, 32], sizes = [16, 32], strides = [1, 1]} : vector<16x96xf32> to vector<16x32xf32>
    %79 = vector.extract_strided_slice %76 {offsets = [0, 64], sizes = [16, 32], strides = [1, 1]} : vector<16x96xf32> to vector<16x32xf32>
    %80 = tpu.concatenate %77, %78, %79 in 0 : vector<16x32xf32>, vector<16x32xf32>, vector<16x32xf32> -> vector<48x32xf32>
    %c0_34 = arith.constant 0 : index
    %c0_35 = arith.constant 0 : index
    %81 = vector.load %arg5[%c0_34, %c0_35] : memref<32x14xf32, #tpu.memory_space<vmem>>, vector<32x14xf32>
    %cst_36 = arith.constant dense<0.000000e+00> : vector<48x14xf32>
    %82 = tpu.matmul %80, %81, %cst_36 {dimension_numbers = #tpu.dot_dimension_numbers<[1], [0], [0], [1], [0, 0, 1, 1], [], []>} : vector<48x32xf32>, vector<32x14xf32>, vector<48x14xf32> -> vector<48x14xf32>
    %c1 = arith.constant 1 : index
    %c0_37 = arith.constant 0 : index
    %c0_38 = arith.constant 0 : index
    %83 = vector.load %arg6[%c1, %c0_37, %c0_38] : memref<2x48x1xf32, #tpu.memory_space<vmem>>, vector<1x48x1xf32>
    %84 = vector.shape_cast %83 : vector<1x48x1xf32> to vector<48x1xf32>
    %85 = vector.broadcast %84 : vector<48x1xf32> to vector<48x14xf32>
    %86 = arith.addf %82, %85 : vector<48x14xf32>
    %cst_39 = arith.constant dense<0xFF800000> : vector<14xf32>
    %87 = vector.multi_reduction <maximumf>, %86, %cst_39 [0] : vector<48x14xf32> to vector<14xf32>
    %88 = vector.shape_cast %87 : vector<14xf32> to vector<1x14xf32>
    %cst_40 = arith.constant -1.000000e+30 : f32
    %89 = vector.broadcast %cst_40 : f32 to vector<1x14xf32>
    %90 = arith.maximumf %88, %89 : vector<1x14xf32>
    %91 = vector.broadcast %90 : vector<1x14xf32> to vector<48x14xf32>
    %92 = arith.subf %86, %91 : vector<48x14xf32>
    %93 = math.exp %92 : vector<48x14xf32>
    %cst_41 = arith.constant dense<0.000000e+00> : vector<14xf32>
    %94 = vector.multi_reduction <add>, %93, %cst_41 [0] : vector<48x14xf32> to vector<14xf32>
    %95 = vector.shape_cast %94 : vector<14xf32> to vector<1x14xf32>
    %cst_42 = arith.constant 1.000000e-30 : f32
    %96 = vector.broadcast %cst_42 : f32 to vector<1x14xf32>
    %97 = arith.maximumf %95, %96 : vector<1x14xf32>
    %98 = tpu.reciprocal %97 {approx = true} : vector<1x14xf32> -> vector<1x14xf32>
    %99 = vector.broadcast %98 : vector<1x14xf32> to vector<48x14xf32>
    %100 = arith.mulf %93, %99 : vector<48x14xf32>
    %cst_43 = arith.constant dense<0.000000e+00> : vector<14x32xf32>
    %101 = tpu.matmul %100, %80, %cst_43 {dimension_numbers = #tpu.dot_dimension_numbers<[0], [0], [1], [1], [0, 1, 1, 1], [], []>} : vector<48x14xf32>, vector<48x32xf32>, vector<14x32xf32> -> vector<14x32xf32>
    %c0_44 = arith.constant 0 : index
    %c0_45 = arith.constant 0 : index
    %102 = vector.load %arg7[%c0_44, %c0_45] : memref<32x28xf32, #tpu.memory_space<vmem>>, vector<32x28xf32>
    %cst_46 = arith.constant dense<0.000000e+00> : vector<14x28xf32>
    %103 = tpu.matmul %101, %102, %cst_46 {dimension_numbers = #tpu.dot_dimension_numbers<[1], [0], [0], [1], [0, 0, 1, 1], [], []>} : vector<14x32xf32>, vector<32x28xf32>, vector<14x28xf32> -> vector<14x28xf32>
    %c0_47 = arith.constant 0 : index
    %c0_48 = arith.constant 0 : index
    %104 = vector.load %arg9[%c0_47, %c0_48] : memref<14x28xf32, #tpu.memory_space<vmem>>, vector<14x28xf32>
    %105 = arith.mulf %103, %104 : vector<14x28xf32>
    %cst_49 = arith.constant dense<0.000000e+00> : vector<28xf32>
    %106 = vector.multi_reduction <add>, %105, %cst_49 [0] : vector<14x28xf32> to vector<28xf32>
    %107 = vector.shape_cast %106 : vector<28xf32> to vector<1x28xf32>
    %c0_50 = arith.constant 0 : index
    %c0_51 = arith.constant 0 : index
    %108 = vector.load %arg8[%c0_50, %c0_51] : memref<1x28xf32, #tpu.memory_space<vmem>>, vector<1x28xf32>
    %109 = arith.addf %107, %108 : vector<1x28xf32>
    %110 = tpu.concatenate %75, %109 in 0 : vector<1x28xf32>, vector<1x28xf32> -> vector<2x28xf32>
    %c0_52 = arith.constant 0 : index
    %c0_53 = arith.constant 0 : index
    %111 = vector.load %arg10[%c0_52, %c0_53] : memref<2x28xf32, #tpu.memory_space<vmem>>, vector<2x28xf32>
    tpu.vector_store %arg10[%c0_52, %c0_53], %110 {strides = array<i32>} : memref<2x28xf32, #tpu.memory_space<vmem>>, vector<2x28xf32>,
    return
  }
  func.func @transform_0(%arg0: i32) -> (i32, i32) {
    %c0_i32 = arith.constant 0 : i32
    %c0_i32_0 = arith.constant 0 : i32
    %c0_i32_1 = arith.constant 0 : i32
    return %c0_i32, %c0_i32_0 : i32, i32
  }
  func.func @transform_1(%arg0: i32) -> (i32, i32) {
    %c0_i32 = arith.constant 0 : i32
    %c0_i32_0 = arith.constant 0 : i32
    %c0_i32_1 = arith.constant 0 : i32
    return %c0_i32, %c0_i32_0 : i32, i32
  }
  func.func @transform_2(%arg0: i32) -> (i32, i32) {
    %c0_i32 = arith.constant 0 : i32
    %c0_i32_0 = arith.constant 0 : i32
    %c0_i32_1 = arith.constant 0 : i32
    return %c0_i32, %c0_i32_0 : i32, i32
  }
  func.func @transform_3(%arg0: i32) -> (i32, i32) {
    %c0_i32 = arith.constant 0 : i32
    %c0_i32_0 = arith.constant 0 : i32
    %c0_i32_1 = arith.constant 0 : i32
    return %c0_i32, %c0_i32_0 : i32, i32
  }
  func.func @transform_4(%arg0: i32) -> (i32, i32) {
    %c0_i32 = arith.constant 0 : i32
    %c0_i32_0 = arith.constant 0 : i32
    %c0_i32_1 = arith.constant 0 : i32
    return %c0_i32, %c0_i32_0 : i32, i32
  }
  func.func @transform_5(%arg0: i32) -> (i32, i32, i32) {
    %c0_i32 = arith.constant 0 : i32
    %c0_i32_0 = arith.constant 0 : i32
    %c0_i32_1 = arith.constant 0 : i32
    %c0_i32_2 = arith.constant 0 : i32
    return %c0_i32, %c0_i32_0, %c0_i32_1 : i32, i32, i32
  }
  func.func @transform_6(%arg0: i32) -> (i32, i32) {
    %c0_i32 = arith.constant 0 : i32
    %c0_i32_0 = arith.constant 0 : i32
    %c0_i32_1 = arith.constant 0 : i32
    return %c0_i32, %c0_i32_0 : i32, i32
  }
  func.func @transform_7(%arg0: i32) -> (i32, i32) {
    %c0_i32 = arith.constant 0 : i32
    %c0_i32_0 = arith.constant 0 : i32
    %c0_i32_1 = arith.constant 0 : i32
    return %c0_i32, %c0_i32_0 : i32, i32
  }
  func.func @transform_8(%arg0: i32) -> (i32, i32) {
    %c0_i32 = arith.constant 0 : i32
    %c0_i32_0 = arith.constant 0 : i32
    %c0_i32_1 = arith.constant 0 : i32
    return %c0_i32, %c0_i32_0 : i32, i32
  }
  func.func @transform_9(%arg0: i32) -> (i32, i32) {
    %c0_i32 = arith.constant 0 : i32
    %c0_i32_0 = arith.constant 0 : i32
    %c0_i32_1 = arith.constant 0 : i32
    return %c0_i32, %c0_i32_0 : i32, i32
  }
}

</mosaic_0001>

<llo_original>
// kernel: tpu_custom_call.1
$region0: #{tpu_custom_call.1}
  #allocation0 [shape = 'u32[]', space=smem, size = 0x4, offset = 0x4, fixed_abs, tag = 'smem constant byte address 0x4 - core index']
  #allocation1 [shape = 'u32[144,128]{1,0:T(1,128)}', space=vmem, size = 0x12000, scoped, tag = 'internal scratch']
  %s0 = inlined_call_operand.vmem [shape: s32[32,1], index: 0, kind: input, shape index: {}]
  %s1 = inlined_call_operand.vmem [shape: f32[50,16], index: 1, kind: input, shape index: {}]
  %s2 = inlined_call_operand.vmem [shape: bf16[80,96], index: 2, kind: input, shape index: {}]
  %s3 = inlined_call_operand.vmem [shape: f32[1,96], index: 3, kind: input, shape index: {}]
  %s4 = inlined_call_operand.vmem [shape: f32[32,14], index: 4, kind: input, shape index: {}]
  %s5 = inlined_call_operand.vmem [shape: f32[2,48,1], index: 5, kind: input, shape index: {}]
  %s6 = inlined_call_operand.vmem [shape: f32[32,28], index: 6, kind: input, shape index: {}]
  %s7 = inlined_call_operand.vmem [shape: f32[1,28], index: 7, kind: input, shape index: {}]
  %s8 = inlined_call_operand.vmem [shape: f32[14,28], index: 8, kind: input, shape index: {}]
  %s9 = inlined_call_operand.hbm [shape: f32[2,28], index: 9, kind: output, shape index: {}]
  %s10 = sld [smem:[#allocation0]]
  $region46: #{tpu_custom_call.1} parent=0
    _
  %s12 = ssub.s32 1, %s10
  %s13 = scalar_select 0, %s12, %s10
  $region1: #{tpu_custom_call.1} parent=0
    #allocation2 [shape = 'u8[1024]{0}', space=vmem, size = 0x400, scoped, tag = 'output window, operand 0, single buffered']
    #allocation3 [shape = 's32[1]{0}', space=sflag, size = 0x4, scoped, tag = 'scoped memory for tpu_custom_call.1']
    %14 = vsyncpa [#allocation3], 0
    // Predicated region
    $region2: #{tpu_custom_call.1} parent=1 // pred_check
      _
    $region3: #{tpu_custom_call.1} parent=1 // pred_check_branch
      %16 = sbr.rel (0) target = $region5
    $region4: #{tpu_custom_call.1} parent=1 // pred_region
      _
    $region5: #{tpu_custom_call.1} parent=1 // pred_fallthru
      _
    // Predicated region
    $region6: #{tpu_custom_call.1} parent=1 // pred_check
      _
    $region7: #{tpu_custom_call.1} parent=1 // pred_check_branch
      %18 = sbr.rel (0) target = $region9
    $region8: #{tpu_custom_call.1} parent=1 // pred_region
      _
    $region9: #{tpu_custom_call.1} parent=1 // pred_fallthru
      _
    // Predicated region
    $region10: #{tpu_custom_call.1} parent=1 // pred_check
      _
    $region11: #{tpu_custom_call.1} parent=1 // pred_check_branch
      %20 = sbr.rel (0) target = $region13
    $region12: #{tpu_custom_call.1} parent=1 // pred_region
      _
    $region13: #{tpu_custom_call.1} parent=1 // pred_fallthru
      _
    // Predicated region
    $region14: #{tpu_custom_call.1} parent=1 // pred_check
      _
    $region15: #{tpu_custom_call.1} parent=1 // pred_check_branch
      %22 = sbr.rel (0) target = $region17
    $region16: #{tpu_custom_call.1} parent=1 // pred_region
      _
    $region17: #{tpu_custom_call.1} parent=1 // pred_fallthru
      _
    // Predicated region
    $region18: #{tpu_custom_call.1} parent=1 // pred_check
      _
    $region19: #{tpu_custom_call.1} parent=1 // pred_check_branch
      %24 = sbr.rel (0) target = $region21
    $region20: #{tpu_custom_call.1} parent=1 // pred_region
      _
    $region21: #{tpu_custom_call.1} parent=1 // pred_fallthru
      _
    // Predicated region
    $region22: #{tpu_custom_call.1} parent=1 // pred_check
      _
    $region23: #{tpu_custom_call.1} parent=1 // pred_check_branch
      %26 = sbr.rel (0) target = $region25
    $region24: #{tpu_custom_call.1} parent=1 // pred_region
      _
    $region25: #{tpu_custom_call.1} parent=1 // pred_fallthru
      _
    // Predicated region
    $region26: #{tpu_custom_call.1} parent=1 // pred_check
      _
    $region27: #{tpu_custom_call.1} parent=1 // pred_check_branch
      %28 = sbr.rel (0) target = $region29
    $region28: #{tpu_custom_call.1} parent=1 // pred_region
      _
    $region29: #{tpu_custom_call.1} parent=1 // pred_fallthru
      _
    // Predicated region
    $region30: #{tpu_custom_call.1} parent=1 // pred_check
      _
    $region31: #{tpu_custom_call.1} parent=1 // pred_check_branch
      %30 = sbr.rel (0) target = $region33
    $region32: #{tpu_custom_call.1} parent=1 // pred_region
      _
    $region33: #{tpu_custom_call.1} parent=1 // pred_fallthru
      _
    // Predicated region
    $region34: #{tpu_custom_call.1} parent=1 // pred_check
      _
    $region35: #{tpu_custom_call.1} parent=1 // pred_check_branch
      %32 = sbr.rel (0) target = $region37
    $region36: #{tpu_custom_call.1} parent=1 // pred_region
      _
    $region37: #{tpu_custom_call.1} parent=1 // pred_fallthru
      _
    %v34 = vlaneseq
    %v35 = vand.u32 %v34, 127
    %v36 = vld [vmem:[%s0] sm:$0xff]
    %v37 = vld [vmem:[%s0 + $0x8] sm:$0xff]
    %v38 = vld [vmem:[%s0 + $0x10] sm:$0xff]
    %v39 = vld [vmem:[%s0 + $0x18] sm:$0xff]
    %40 = vset.pattern.permute.xlu0 0
    %41 = vperm.xlu0 %40, %v36
    %v42 = vpop.permute.xlu0 %41
    %43 = vset.pattern.permute.xlu0 0
    %44 = vperm.xlu0 %43, %v37
    %v45 = vpop.permute.xlu0 %44
    %46 = vset.pattern.permute.xlu0 0
    %47 = vperm.xlu0 %46, %v38
    %v48 = vpop.permute.xlu0 %47
    %49 = vset.pattern.permute.xlu0 0
    %50 = vperm.xlu0 %49, %v39
    %v51 = vpop.permute.xlu0 %50
    %vm52 = vcmp.eq.s32.totalorder %v35, %v42
    %vm53 = vcmp.eq.s32.totalorder %v35, %v45
    %vm54 = vcmp.eq.s32.totalorder %v35, %v48
    %vm55 = vcmp.eq.s32.totalorder %v35, %v51
    %v56 = vsel %vm52, 1, 0
    %v57 = vsel %vm53, 1, 0
    %v58 = vsel %vm54, 1, 0
    %v59 = vsel %vm55, 1, 0
    %v60 = vcvt.s32.f32 %v56
    %v61 = vcvt.s32.f32 %v57
    %v62 = vcvt.s32.f32 %v58
    %v63 = vcvt.s32.f32 %v59
    %v64 = vld [vmem:[%s1] sm:$0xff]
    %v65 = vld [vmem:[%s1 + $0x8] sm:$0xff]
    %v66 = vld [vmem:[%s1 + $0x10] sm:$0xff]
    %v67 = vld [vmem:[%s1 + $0x18] sm:$0xff]
    %v68 = vld [vmem:[%s1 + $0x20] sm:$0xff]
    %v69 = vld [vmem:[%s1 + $0x28] sm:$0xff]
    %v70 = vld [vmem:[%s1 + $0x30] sm:$0x3]
    %vm71 = vcmask 408576
    %v73 = vsel %vm71, %v60, 0
    %v76 = vsel %vm71, %v61, 0
    %v79 = vsel %vm71, %v62, 0
    %v82 = vsel %vm71, %v63, 0
    %vm84 = vcmask 1041408
    %v86 = vsel %vm84, %v70, 0
    %88 = vmatprep.subr.mxu0 0.0
    %89 = vmatpush1.msra.mxu0 %v64
    %90 = vmatprep.subr.mxu0 0.0
    %91 = vmatpush1.msra.mxu0 %v65
    %92 = vmatprep.subr.mxu0 0.0
    %93 = vmatpush1.msra.mxu0 %v66
    %94 = vmatprep.subr.mxu0 0.0
    %95 = vmatpush1.msra.mxu0 %v67
    %96 = vmatprep.subr.mxu0 0.0
    %97 = vmatpush1.msra.mxu0 %v68
    %98 = vmatprep.subr.mxu0 0.0
    %99 = vmatpush1.msra.mxu0 %v69
    %100 = vmatprep.subr.mxu0 0.0
    %101 = vmatpush1.msra.mxu0 %v86
    %102 = vmatprep.subr.mxu0 0.0
    %103 = vmatpush1.msra.mxu0 0.0
    %104 = vmatprep.subr.mxu0 0.0
    %105 = vmatpush1.msra.mxu0 0.0
    %106 = vmatprep.subr.mxu0 0.0
    %107 = vmatpush1.msra.mxu0 0.0
    %108 = vmatprep.subr.mxu0 0.0
    %109 = vmatpush1.msra.mxu0 0.0
    %110 = vmatprep.subr.mxu0 0.0
    %111 = vmatpush1.msra.mxu0 0.0
    %112 = vmatprep.subr.mxu0 0.0
    %113 = vmatpush1.msra.mxu0 0.0
    %114 = vmatprep.subr.mxu0 0.0
    %115 = vmatpush1.msra.mxu0 0.0
    %116 = vmatprep.subr.mxu0 0.0
    %117 = vmatpush1.msra.mxu0 0.0
    %118 = vmatprep.subr.mxu0 0.0
    %119 = vmatpush1.msra.mxu0 0.0
    %120 = vmatprep.subr.mxu0 0.0
    %121 = vmatpush1.msra.mxu0 0.0
    %122 = vmatprep.subr.mxu0 0.0
    %123 = vmatpush1.msra.mxu0 0.0
    %124 = vmatprep.subr.mxu0 0.0
    %125 = vmatpush1.msra.mxu0 0.0
    %126 = vmatprep.subr.mxu0 0.0
    %127 = vmatpush1.msra.mxu0 0.0
    %128 = vmatprep.subr.mxu0 0.0
    %129 = vmatpush1.msra.mxu0 0.0
    %130 = vmatprep.subr.mxu0 0.0
    %131 = vmatpush1.msra.mxu0 0.0
    %132 = vmatprep.subr.mxu0 0.0
    %133 = vmatpush1.msra.mxu0 0.0
    %134 = vmatprep.subr.mxu0 0.0
    %135 = vmatpush1.msra.mxu0 0.0
    %136 = vmatprep.subr.mxu0 0.0
    %137 = vmatpush1.msra.mxu0 0.0
    %138 = vmatprep.subr.mxu0 0.0
    %139 = vmatpush1.msra.mxu0 0.0
    %140 = vmatprep.subr.mxu0 0.0
    %141 = vmatpush1.msra.mxu0 0.0
    %142 = vmatprep.subr.mxu0 0.0
    %143 = vmatpush1.msra.mxu0 0.0
    %144 = vmatprep.subr.mxu0 0.0
    %145 = vmatpush1.msra.mxu0 0.0
    %146 = vmatprep.subr.mxu0 0.0
    %147 = vmatpush1.msra.mxu0 0.0
    %148 = vmatprep.subr.mxu0 0.0
    %149 = vmatpush1.msra.mxu0 0.0
    %150 = vmatprep.subr.mxu0 0.0
    %151 = vmatpush1.msra.mxu0 0.0
    %152 = vmatprep.mubr.f32.mxu0 0.0
    %153 = vmatmul.mubr.f32.gmra.mrb[0].mxu0 %v73
    %v154 = vpop.f32.mrb[0].mxu0
    %v155 = vadd.f32 0.0, %v154
    %v156 = vpop.f32.mrb[0].mxu0
    %157 = vmatprep.mubr.f32.mxu0 0.0
    %158 = vmatmul.mubr.f32.gmra.mrb[0].mxu0 %v76
    %v159 = vpop.f32.mrb[0].mxu0
    %v160 = vadd.f32 0.0, %v159
    %v161 = vpop.f32.mrb[0].mxu0
    %162 = vmatprep.mubr.f32.mxu0 0.0
    %163 = vmatmul.mubr.f32.gmra.mrb[0].mxu0 %v79
    %v164 = vpop.f32.mrb[0].mxu0
    %v165 = vadd.f32 0.0, %v164
    %v166 = vpop.f32.mrb[0].mxu0
    %167 = vmatprep.mubr.f32.mxu0 0.0
    %168 = vmatmul.mubr.f32.gmra.mrb[0].mxu0 %v82
    %v169 = vpop.f32.mrb[0].mxu0
    %v170 = vadd.f32 0.0, %v169
    %v171 = vpop.f32.mrb[0].mxu0
    %172 = vdwg.mxu0
    %v173 = vld [vmem:[%s2] sm:$0xf]
    %v174 = vld [vmem:[%s2 + $0x4] sm:$0xf]
    %v175 = vld [vmem:[%s2 + $0x8] sm:$0xf]
    %v176 = vld [vmem:[%s2 + $0xc] sm:$0xf]
    %v177 = vld [vmem:[%s2 + $0x10] sm:$0xf]
    %v178 = vld [vmem:[%s2 + $0x14] sm:$0xf]
    %v179 = vld [vmem:[%s2 + $0x18] sm:$0xf]
    %v180 = vld [vmem:[%s2 + $0x1c] sm:$0xf]
    %v181 = vld [vmem:[%s2 + $0x20] sm:$0xf]
    %v182 = vld [vmem:[%s2 + $0x24] sm:$0xf]
    %v183 = vpack.c.bf16 %v160, %v155
    %v184 = vpack.c.bf16 %v170, %v165
    %v185 = vpack.c.bf16 0.0, 0.0
    %vm186 = vsmask.f32 7424
    %v188 = vshrl.u32 %v183, 16
    %v190 = vshll.u32 %v183, 16
    %v192 = vrot.slane %v190, 1
    %v193 = vor.u32 %v188, %v192
    %v195 = vshll.u32 %v184, 16
    %v197 = vrot.slane %v195, 1
    %v198 = vsel %vm186, %v193, %v197
    %v199 = vshrl.u32 %v184, 16
    %v201 = vor.u32 %v199, %v197
    %v203 = vshll.u32 %v185, 16
    %v205 = vrot.slane %v203, 1
    %v206 = vsel %vm186, %v201, %v205
    %v209 = vunpack.c.l.b16 %v175
    %v210 = vunpack.c.l.b16 %v176
    %v211 = vpack.c.b16 %v210, %v209
    %vm213 = vcmask 130048
    %v215 = vsel %vm213, %v198, 0
    %v218 = vsel %vm213, %v206, 0
    %220 = vmatprep.subr.bf16.mxu0 0
    %221 = vmatpush1.bf16.msra.mxu0 %v211
    %222 = vmatprep.subr.bf16.mxu0 0
    %223 = vmatpush1.bf16.msra.mxu0 0
    %224 = vmatprep.subr.bf16.mxu0 0
    %225 = vmatpush1.bf16.msra.mxu0 0
    %226 = vmatprep.subr.bf16.mxu0 0
    %227 = vmatpush1.bf16.msra.mxu0 0
    %228 = vmatprep.subr.bf16.mxu0 0
    %229 = vmatpush1.bf16.msra.mxu0 0
    %230 = vmatprep.subr.bf16.mxu0 0
    %231 = vmatpush1.bf16.msra.mxu0 0
    %232 = vmatprep.subr.bf16.mxu0 0
    %233 = vmatpush1.bf16.msra.mxu0 0
    %234 = vmatprep.subr.bf16.mxu0 0
    %235 = vmatpush1.bf16.msra.mxu0 0
    %236 = vmatprep.subr.bf16.mxu0 0
    %237 = vmatpush1.bf16.msra.mxu0 0
    %238 = vmatprep.subr.bf16.mxu0 0
    %239 = vmatpush1.bf16.msra.mxu0 0
    %240 = vmatprep.subr.bf16.mxu0 0
    %241 = vmatpush1.bf16.msra.mxu0 0
    %242 = vmatprep.subr.bf16.mxu0 0
    %243 = vmatpush1.bf16.msra.mxu0 0
    %244 = vmatprep.subr.bf16.mxu0 0
    %245 = vmatpush1.bf16.msra.mxu0 0
    %246 = vmatprep.subr.bf16.mxu0 0
    %247 = vmatpush1.bf16.msra.mxu0 0
    %248 = vmatprep.subr.bf16.mxu0 0
    %249 = vmatpush1.bf16.msra.mxu0 0
    %250 = vmatprep.subr.bf16.mxu0 0
    %251 = vmatpush1.bf16.msra.mxu0 0
    %252 = vmatprep.mubr.bf16.mxu0 0
    %253 = vmatmul.mubr.bf16.gmra.mrb[0].mxu0 %v215
    %v254 = vpop.f32.mrb[0].mxu0
    %v255 = vadd.f32 0.0, %v254
    %v256 = vpop.f32.mrb[0].mxu0
    %v257 = vpop.f32.mrb[0].mxu0
    %v258 = vadd.f32 0.0, %v257
    %v259 = vpop.f32.mrb[0].mxu0
    %260 = vmatprep.mubr.bf16.mxu0 0
    %261 = vmatmul.mubr.bf16.gmra.mrb[0].mxu0 %v218
    %v262 = vpop.f32.mrb[0].mxu0
    %v263 = vadd.f32 0.0, %v262
    %v264 = vpop.f32.mrb[0].mxu0
    %v265 = vpop.f32.mrb[0].mxu0
    %v266 = vadd.f32 0.0, %v265
    %v267 = vpop.f32.mrb[0].mxu0
    %268 = vdwg.mxu0
    %v271 = vunpack.c.l.b16 %v173
    %v272 = vunpack.c.l.b16 %v174
    %v273 = vpack.c.b16 %v272, %v271
    %v275 = vsel %vm213, %v183, 0
    %v277 = vsel %vm213, %v184, 0
    %279 = vmatprep.subr.bf16.mxu0 0
    %280 = vmatpush1.bf16.msra.mxu0 %v273
    %281 = vmatprep.subr.bf16.mxu0 0
    %282 = vmatpush1.bf16.msra.mxu0 0
    %283 = vmatprep.subr.bf16.mxu0 0
    %284 = vmatpush1.bf16.msra.mxu0 0
    %285 = vmatprep.subr.bf16.mxu0 0
    %286 = vmatpush1.bf16.msra.mxu0 0
    %287 = vmatprep.subr.bf16.mxu0 0
    %288 = vmatpush1.bf16.msra.mxu0 0
    %289 = vmatprep.subr.bf16.mxu0 0
    %290 = vmatpush1.bf16.msra.mxu0 0
    %291 = vmatprep.subr.bf16.mxu0 0
    %292 = vmatpush1.bf16.msra.mxu0 0
    %293 = vmatprep.subr.bf16.mxu0 0
    %294 = vmatpush1.bf16.msra.mxu0 0
    %295 = vmatprep.subr.bf16.mxu0 0
    %296 = vmatpush1.bf16.msra.mxu0 0
    %297 = vmatprep.subr.bf16.mxu0 0
    %298 = vmatpush1.bf16.msra.mxu0 0
    %299 = vmatprep.subr.bf16.mxu0 0
    %300 = vmatpush1.bf16.msra.mxu0 0
    %301 = vmatprep.subr.bf16.mxu0 0
    %302 = vmatpush1.bf16.msra.mxu0 0
    %303 = vmatprep.subr.bf16.mxu0 0
    %304 = vmatpush1.bf16.msra.mxu0 0
    %305 = vmatprep.subr.bf16.mxu0 0
    %306 = vmatpush1.bf16.msra.mxu0 0
    %307 = vmatprep.subr.bf16.mxu0 0
    %308 = vmatpush1.bf16.msra.mxu0 0
    %309 = vmatprep.subr.bf16.mxu0 0
    %310 = vmatpush1.bf16.msra.mxu0 0
    %311 = vmatprep.mubr.bf16.mxu0 0
    %312 = vmatmul.mubr.bf16.gmra.mrb[0].mxu0 %v275
    %v313 = vpop.f32.mrb[0].mxu0
    %v314 = vadd.f32 %v255, %v313
    %v315 = vpop.f32.mrb[0].mxu0
    %v316 = vpop.f32.mrb[0].mxu0
    %v317 = vadd.f32 %v258, %v316
    %v318 = vpop.f32.mrb[0].mxu0
    %319 = vmatprep.mubr.bf16.mxu0 0
    %320 = vmatmul.mubr.bf16.gmra.mrb[0].mxu0 %v277
    %v321 = vpop.f32.mrb[0].mxu0
    %v322 = vadd.f32 %v263, %v321
    %v323 = vpop.f32.mrb[0].mxu0
    %v324 = vpop.f32.mrb[0].mxu0
    %v325 = vadd.f32 %v266, %v324
    %v326 = vpop.f32.mrb[0].mxu0
    %327 = vdwg.mxu0
    %vm331 = vcmask 1046528
    %v332 = vrot.slane %v183, 1
    %v333 = vrot.slane %v184, 1
    %v334 = vsel %vm331, %v332, %v333
    %v335 = vrot.slane %v185, 1
    %v336 = vsel %vm331, %v333, %v335
    %v339 = vunpack.c.l.b16 %v177
    %v340 = vunpack.c.l.b16 %v178
    %v341 = vpack.c.b16 %v340, %v339
    %v344 = vsel %vm213, %v334, 0
    %v347 = vsel %vm213, %v336, 0
    %349 = vmatprep.subr.bf16.mxu0 0
    %350 = vmatpush1.bf16.msra.mxu0 %v341
    %351 = vmatprep.subr.bf16.mxu0 0
    %352 = vmatpush1.bf16.msra.mxu0 0
    %353 = vmatprep.subr.bf16.mxu0 0
    %354 = vmatpush1.bf16.msra.mxu0 0
    %355 = vmatprep.subr.bf16.mxu0 0
    %356 = vmatpush1.bf16.msra.mxu0 0
    %357 = vmatprep.subr.bf16.mxu0 0
    %358 = vmatpush1.bf16.msra.mxu0 0
    %359 = vmatprep.subr.bf16.mxu0 0
    %360 = vmatpush1.bf16.msra.mxu0 0
    %361 = vmatprep.subr.bf16.mxu0 0
    %362 = vmatpush1.bf16.msra.mxu0 0
    %363 = vmatprep.subr.bf16.mxu0 0
    %364 = vmatpush1.bf16.msra.mxu0 0
    %365 = vmatprep.subr.bf16.mxu0 0
    %366 = vmatpush1.bf16.msra.mxu0 0
    %367 = vmatprep.subr.bf16.mxu0 0
    %368 = vmatpush1.bf16.msra.mxu0 0
    %369 = vmatprep.subr.bf16.mxu0 0
    %370 = vmatpush1.bf16.msra.mxu0 0
    %371 = vmatprep.subr.bf16.mxu0 0
    %372 = vmatpush1.bf16.msra.mxu0 0
    %373 = vmatprep.subr.bf16.mxu0 0
    %374 = vmatpush1.bf16.msra.mxu0 0
    %375 = vmatprep.subr.bf16.mxu0 0
    %376 = vmatpush1.bf16.msra.mxu0 0
    %377 = vmatprep.subr.bf16.mxu0 0
    %378 = vmatpush1.bf16.msra.mxu0 0
    %379 = vmatprep.subr.bf16.mxu0 0
    %380 = vmatpush1.bf16.msra.mxu0 0
    %381 = vmatprep.mubr.bf16.mxu0 0
    %382 = vmatmul.mubr.bf16.gmra.mrb[0].mxu0 %v344
    %v383 = vpop.f32.mrb[0].mxu0
    %v384 = vadd.f32 0.0, %v383
    %v385 = vpop.f32.mrb[0].mxu0
    %v386 = vpop.f32.mrb[0].mxu0
    %v387 = vadd.f32 0.0, %v386
    %v388 = vpop.f32.mrb[0].mxu0
    %389 = vmatprep.mubr.bf16.mxu0 0
    %390 = vmatmul.mubr.bf16.gmra.mrb[0].mxu0 %v347
    %v391 = vpop.f32.mrb[0].mxu0
    %v392 = vadd.f32 0.0, %v391
    %v393 = vpop.f32.mrb[0].mxu0
    %v394 = vpop.f32.mrb[0].mxu0
    %v395 = vadd.f32 0.0, %v394
    %v396 = vpop.f32.mrb[0].mxu0
    %397 = vdwg.mxu0
    %v398 = vadd.f32 %v314, %v384
    %v399 = vadd.f32 %v317, %v387
    %v400 = vadd.f32 %v322, %v392
    %v401 = vadd.f32 %v325, %v395
    %vm402 = vsmask.f32 6400
    %v403 = vrot.slane %v188, 1
    %v404 = vrot.slane %v190, 2
    %v405 = vor.u32 %v403, %v404
    %v406 = vrot.slane %v199, 1
    %v407 = vrot.slane %v195, 2
    %v408 = vor.u32 %v406, %v407
    %v409 = vsel %vm402, %v405, %v408
    %v410 = vshrl.u32 %v185, 16
    %v412 = vrot.slane %v410, 1
    %v413 = vrot.slane %v203, 2
    %v414 = vor.u32 %v412, %v413
    %v415 = vsel %vm402, %v408, %v414
    %v418 = vunpack.c.l.b16 %v179
    %v419 = vunpack.c.l.b16 %v180
    %v420 = vpack.c.b16 %v419, %v418
    %v423 = vsel %vm213, %v409, 0
    %v426 = vsel %vm213, %v415, 0
    %428 = vmatprep.subr.bf16.mxu0 0
    %429 = vmatpush1.bf16.msra.mxu0 %v420
    %430 = vmatprep.subr.bf16.mxu0 0
    %431 = vmatpush1.bf16.msra.mxu0 0
    %432 = vmatprep.subr.bf16.mxu0 0
    %433 = vmatpush1.bf16.msra.mxu0 0
    %434 = vmatprep.subr.bf16.mxu0 0
    %435 = vmatpush1.bf16.msra.mxu0 0
    %436 = vmatprep.subr.bf16.mxu0 0
    %437 = vmatpush1.bf16.msra.mxu0 0
    %438 = vmatprep.subr.bf16.mxu0 0
    %439 = vmatpush1.bf16.msra.mxu0 0
    %440 = vmatprep.subr.bf16.mxu0 0
    %441 = vmatpush1.bf16.msra.mxu0 0
    %442 = vmatprep.subr.bf16.mxu0 0
    %443 = vmatpush1.bf16.msra.mxu0 0
    %444 = vmatprep.subr.bf16.mxu0 0
    %445 = vmatpush1.bf16.msra.mxu0 0
    %446 = vmatprep.subr.bf16.mxu0 0
    %447 = vmatpush1.bf16.msra.mxu0 0
    %448 = vmatprep.subr.bf16.mxu0 0
    %449 = vmatpush1.bf16.msra.mxu0 0
    %450 = vmatprep.subr.bf16.mxu0 0
    %451 = vmatpush1.bf16.msra.mxu0 0
    %452 = vmatprep.subr.bf16.mxu0 0
    %453 = vmatpush1.bf16.msra.mxu0 0
    %454 = vmatprep.subr.bf16.mxu0 0
    %455 = vmatpush1.bf16.msra.mxu0 0
    %456 = vmatprep.subr.bf16.mxu0 0
    %457 = vmatpush1.bf16.msra.mxu0 0
    %458 = vmatprep.subr.bf16.mxu0 0
    %459 = vmatpush1.bf16.msra.mxu0 0
    %460 = vmatprep.mubr.bf16.mxu0 0
    %461 = vmatmul.mubr.bf16.gmra.mrb[0].mxu0 %v423
    %v462 = vpop.f32.mrb[0].mxu0
    %v463 = vadd.f32 0.0, %v462
    %v464 = vpop.f32.mrb[0].mxu0
    %v465 = vpop.f32.mrb[0].mxu0
    %v466 = vadd.f32 0.0, %v465
    %v467 = vpop.f32.mrb[0].mxu0
    %468 = vmatprep.mubr.bf16.mxu0 0
    %469 = vmatmul.mubr.bf16.gmra.mrb[0].mxu0 %v426
    %v470 = vpop.f32.mrb[0].mxu0
    %v471 = vadd.f32 0.0, %v470
    %v472 = vpop.f32.mrb[0].mxu0
    %v473 = vpop.f32.mrb[0].mxu0
    %v474 = vadd.f32 0.0, %v473
    %v475 = vpop.f32.mrb[0].mxu0
    %476 = vdwg.mxu0
    %v477 = vadd.f32 %v398, %v463
    %v478 = vadd.f32 %v399, %v466
    %v479 = vadd.f32 %v400, %v471
    %v480 = vadd.f32 %v401, %v474
    %vm481 = vcmask 1045504
    %v482 = vrot.slane %v183, 2
    %v483 = vrot.slane %v184, 2
    %v484 = vsel %vm481, %v482, %v483
    %v485 = vrot.slane %v185, 2
    %v486 = vsel %vm481, %v483, %v485
    %v489 = vunpack.c.l.b16 %v181
    %v490 = vunpack.c.l.b16 %v182
    %v491 = vpack.c.b16 %v490, %v489
    %v494 = vsel %vm213, %v484, 0
    %v497 = vsel %vm213, %v486, 0
    %499 = vmatprep.subr.bf16.mxu0 0
    %500 = vmatpush1.bf16.msra.mxu0 %v491
    %501 = vmatprep.subr.bf16.mxu0 0
    %502 = vmatpush1.bf16.msra.mxu0 0
    %503 = vmatprep.subr.bf16.mxu0 0
    %504 = vmatpush1.bf16.msra.mxu0 0
    %505 = vmatprep.subr.bf16.mxu0 0
    %506 = vmatpush1.bf16.msra.mxu0 0
    %507 = vmatprep.subr.bf16.mxu0 0
    %508 = vmatpush1.bf16.msra.mxu0 0
    %509 = vmatprep.subr.bf16.mxu0 0
    %510 = vmatpush1.bf16.msra.mxu0 0
    %511 = vmatprep.subr.bf16.mxu0 0
    %512 = vmatpush1.bf16.msra.mxu0 0
    %513 = vmatprep.subr.bf16.mxu0 0
    %514 = vmatpush1.bf16.msra.mxu0 0
    %515 = vmatprep.subr.bf16.mxu0 0
    %516 = vmatpush1.bf16.msra.mxu0 0
    %517 = vmatprep.subr.bf16.mxu0 0
    %518 = vmatpush1.bf16.msra.mxu0 0
    %519 = vmatprep.subr.bf16.mxu0 0
    %520 = vmatpush1.bf16.msra.mxu0 0
    %521 = vmatprep.subr.bf16.mxu0 0
    %522 = vmatpush1.bf16.msra.mxu0 0
    %523 = vmatprep.subr.bf16.mxu0 0
    %524 = vmatpush1.bf16.msra.mxu0 0
    %525 = vmatprep.subr.bf16.mxu0 0
    %526 = vmatpush1.bf16.msra.mxu0 0
    %527 = vmatprep.subr.bf16.mxu0 0
    %528 = vmatpush1.bf16.msra.mxu0 0
    %529 = vmatprep.subr.bf16.mxu0 0
    %530 = vmatpush1.bf16.msra.mxu0 0
    %531 = vmatprep.mubr.bf16.mxu0 0
    %532 = vmatmul.mubr.bf16.gmra.mrb[0].mxu0 %v494
    %v533 = vpop.f32.mrb[0].mxu0
    %v534 = vadd.f32 0.0, %v533
    %v535 = vpop.f32.mrb[0].mxu0
    %v536 = vpop.f32.mrb[0].mxu0
    %v537 = vadd.f32 0.0, %v536
    %v538 = vpop.f32.mrb[0].mxu0
    %539 = vmatprep.mubr.bf16.mxu0 0
    %540 = vmatmul.mubr.bf16.gmra.mrb[0].mxu0 %v497
    %v541 = vpop.f32.mrb[0].mxu0
    %v542 = vadd.f32 0.0, %v541
    %v543 = vpop.f32.mrb[0].mxu0
    %v544 = vpop.f32.mrb[0].mxu0
    %v545 = vadd.f32 0.0, %v544
    %v546 = vpop.f32.mrb[0].mxu0
    %547 = vdwg.mxu0
    %v548 = vadd.f32 %v477, %v534
    %v549 = vadd.f32 %v478, %v537
    %v550 = vadd.f32 %v479, %v542
    %v551 = vadd.f32 %v480, %v545
    %v552 = vld [vmem:[%s3] sm:$0x1]
    %v554 = vlaneseq
    %v555 = vshrl.u32 %v554, 7
    %v556 = vsub.s32 0, %v555
    %v557 = vrot.slane %v552, %v556
    %v559 = vadd.f32 %v548, %v557
    %v560 = vadd.f32 %v549, %v557
    %v561 = vadd.f32 %v550, %v557
    %v562 = vadd.f32 %v551, %v557
    %v563 = vmax.f32 %v559, 0.0
    %v564 = vmax.f32 %v560, 0.0
    %v565 = vmax.f32 %v561, 0.0
    %v566 = vmax.f32 %v562, 0.0
    %569 = vrot.lane.b32.xlu0 %v563, 96
    %v570 = vpop.permute.xlu0 %569
    %571 = vrot.lane.b32.xlu0 %v564, 96
    %v572 = vpop.permute.xlu0 %571
    %575 = vrot.lane.b32.xlu0 %v563, 64
    %v576 = vpop.permute.xlu0 %575
    %577 = vrot.lane.b32.xlu0 %v564, 64
    %v578 = vpop.permute.xlu0 %577
    %v581 = vld [vmem:[%s4] sm:$0xff]
    %v582 = vld [vmem:[%s4 + $0x8] sm:$0xff]
    %v583 = vld [vmem:[%s4 + $0x10] sm:$0xff]
    %v584 = vld [vmem:[%s4 + $0x18] sm:$0xff]
    %v585 = vld [vmem:[%s5] sm:$0xff]
    %v586 = vld [vmem:[%s5 + $0x8] sm:$0xff]
    %v587 = vld [vmem:[%s5 + $0x10] sm:$0xff]
    %v588 = vld [vmem:[%s5 + $0x18] sm:$0xff]
    %v589 = vld [vmem:[%s5 + $0x20] sm:$0xff]
    %v590 = vld [vmem:[%s5 + $0x28] sm:$0xff]
    %592 = vset.pattern.permute.xlu0 0
    %593 = vperm.xlu0 %592, %v585
    %v594 = vpop.permute.xlu0 %593
    %597 = vset.pattern.permute.xlu0 0
    %598 = vperm.xlu0 %597, %v586
    %v599 = vpop.permute.xlu0 %598
    %602 = vset.pattern.permute.xlu0 0
    %603 = vperm.xlu0 %602, %v587
    %v604 = vpop.permute.xlu0 %603
    %607 = vset.pattern.permute.xlu0 0
    %608 = vperm.xlu0 %607, %v588
    %v609 = vpop.permute.xlu0 %608
    %612 = vset.pattern.permute.xlu0 0
    %613 = vperm.xlu0 %612, %v589
    %v614 = vpop.permute.xlu0 %613
    %617 = vset.pattern.permute.xlu0 0
    %618 = vperm.xlu0 %617, %v590
    %v619 = vpop.permute.xlu0 %618
    %vm621 = vcmask 261120
    %v622 = vsel %vm621, %v563, 0
    %v624 = vsel %vm621, %v564, 0
    %v626 = vsel %vm621, %v570, 0
    %v628 = vsel %vm621, %v572, 0
    %v630 = vsel %vm621, %v576, 0
    %v632 = vsel %vm621, %v578, 0
    %634 = vmatprep.subr.mxu0 0.0
    %635 = vmatpush1.msra.mxu0 %v581
    %636 = vmatprep.subr.mxu0 0.0
    %637 = vmatpush1.msra.mxu0 %v582
    %638 = vmatprep.subr.mxu0 0.0
    %639 = vmatpush1.msra.mxu0 %v583
    %640 = vmatprep.subr.mxu0 0.0
    %641 = vmatpush1.msra.mxu0 %v584
    %642 = vmatprep.subr.mxu0 0.0
    %643 = vmatpush1.msra.mxu0 0.0
    %644 = vmatprep.subr.mxu0 0.0
    %645 = vmatpush1.msra.mxu0 0.0
    %646 = vmatprep.subr.mxu0 0.0
    %647 = vmatpush1.msra.mxu0 0.0
    %648 = vmatprep.subr.mxu0 0.0
    %649 = vmatpush1.msra.mxu0 0.0
    %650 = vmatprep.subr.mxu0 0.0
    %651 = vmatpush1.msra.mxu0 0.0
    %652 = vmatprep.subr.mxu0 0.0
    %653 = vmatpush1.msra.mxu0 0.0
    %654 = vmatprep.subr.mxu0 0.0
    %655 = vmatpush1.msra.mxu0 0.0
    %656 = vmatprep.subr.mxu0 0.0
    %657 = vmatpush1.msra.mxu0 0.0
    %658 = vmatprep.subr.mxu0 0.0
    %659 = vmatpush1.msra.mxu0 0.0
    %660 = vmatprep.subr.mxu0 0.0
    %661 = vmatpush1.msra.mxu0 0.0
    %662 = vmatprep.subr.mxu0 0.0
    %663 = vmatpush1.msra.mxu0 0.0
    %664 = vmatprep.subr.mxu0 0.0
    %665 = vmatpush1.msra.mxu0 0.0
    %666 = vmatprep.subr.mxu0 0.0
    %667 = vmatpush1.msra.mxu0 0.0
    %668 = vmatprep.subr.mxu0 0.0
    %669 = vmatpush1.msra.mxu0 0.0
    %670 = vmatprep.subr.mxu0 0.0
    %671 = vmatpush1.msra.mxu0 0.0
    %672 = vmatprep.subr.mxu0 0.0
    %673 = vmatpush1.msra.mxu0 0.0
    %674 = vmatprep.subr.mxu0 0.0
    %675 = vmatpush1.msra.mxu0 0.0
    %676 = vmatprep.subr.mxu0 0.0
    %677 = vmatpush1.msra.mxu0 0.0
    %678 = vmatprep.subr.mxu0 0.0
    %679 = vmatpush1.msra.mxu0 0.0
    %680 = vmatprep.subr.mxu0 0.0
    %681 = vmatpush1.msra.mxu0 0.0
    %682 = vmatprep.subr.mxu0 0.0
    %683 = vmatpush1.msra.mxu0 0.0
    %684 = vmatprep.subr.mxu0 0.0
    %685 = vmatpush1.msra.mxu0 0.0
    %686 = vmatprep.subr.mxu0 0.0
    %687 = vmatpush1.msra.mxu0 0.0
    %688 = vmatprep.subr.mxu0 0.0
    %689 = vmatpush1.msra.mxu0 0.0
    %690 = vmatprep.subr.mxu0 0.0
    %691 = vmatpush1.msra.mxu0 0.0
    %692 = vmatprep.subr.mxu0 0.0
    %693 = vmatpush1.msra.mxu0 0.0
    %694 = vmatprep.subr.mxu0 0.0
    %695 = vmatpush1.msra.mxu0 0.0
    %696 = vmatprep.subr.mxu0 0.0
    %697 = vmatpush1.msra.mxu0 0.0
    %698 = vmatprep.mubr.f32.mxu0 0.0
    %699 = vmatmul.mubr.f32.gmra.mrb[0].mxu0 %v622
    %v700 = vpop.f32.mrb[0].mxu0
    %v701 = vadd.f32 %v594, %v700
    %v702 = vpop.f32.mrb[0].mxu0
    %703 = vmatprep.mubr.f32.mxu0 0.0
    %704 = vmatmul.mubr.f32.gmra.mrb[0].mxu0 %v624
    %v705 = vpop.f32.mrb[0].mxu0
    %v706 = vadd.f32 %v599, %v705
    %v707 = vpop.f32.mrb[0].mxu0
    %708 = vmatprep.mubr.f32.mxu0 0.0
    %709 = vmatmul.mubr.f32.gmra.mrb[0].mxu0 %v626
    %v710 = vpop.f32.mrb[0].mxu0
    %v711 = vadd.f32 %v604, %v710
    %v712 = vpop.f32.mrb[0].mxu0
    %713 = vmatprep.mubr.f32.mxu0 0.0
    %714 = vmatmul.mubr.f32.gmra.mrb[0].mxu0 %v628
    %v715 = vpop.f32.mrb[0].mxu0
    %v716 = vadd.f32 %v609, %v715
    %v717 = vpop.f32.mrb[0].mxu0
    %718 = vmatprep.mubr.f32.mxu0 0.0
    %719 = vmatmul.mubr.f32.gmra.mrb[0].mxu0 %v630
    %v720 = vpop.f32.mrb[0].mxu0
    %v721 = vadd.f32 %v614, %v720
    %v722 = vpop.f32.mrb[0].mxu0
    %723 = vmatprep.mubr.f32.mxu0 0.0
    %724 = vmatmul.mubr.f32.gmra.mrb[0].mxu0 %v632
    %v725 = vpop.f32.mrb[0].mxu0
    %v726 = vadd.f32 %v619, %v725
    %v727 = vpop.f32.mrb[0].mxu0
    %728 = vdwg.mxu0
    %vm729 = vcmask 113664
    %v730 = vsel %vm729, %v701, -inf
    %v731 = vsel %vm729, %v706, -inf
    %v732 = vsel %vm729, %v711, -inf
    %v733 = vsel %vm729, %v716, -inf
    %v734 = vsel %vm729, %v721, -inf
    %v735 = vmax.f32 %v730, %v734
    %v736 = vsel %vm729, %v726, -inf
    %v737 = vmax.f32 %v731, %v736
    %v738 = vmax.f32 %v735, %v737
    %v739 = vmax.f32 %v732, %v733
    %v740 = vmax.f32 %v738, %v739
    %v741 = vrot.slane %v740, 4
    %v742 = vmax.f32 %v740, %v741
    %v743 = vrot.slane %v742, 2
    %v744 = vmax.f32 %v742, %v743
    %v745 = vrot.slane %v744, 1
    %v746 = vmax.f32 %v744, %v745
    %v747 = vmax.f32 %v746, -1e+30
    %v748 = vsub.f32 %v701, %v747
    %v749 = vsub.f32 %v706, %v747
    %v750 = vsub.f32 %v711, %v747
    %v751 = vsub.f32 %v716, %v747
    %v752 = vsub.f32 %v721, %v747
    %v753 = vsub.f32 %v726, %v747
    %v754 = vmul.f32 %v748, 1.442695
    %v755 = vpow.pop %v754
    %v756 = vmul.f32 %v749, 1.442695
    %v757 = vpow.pop %v756
    %v758 = vmul.f32 %v750, 1.442695
    %v759 = vpow.pop %v758
    %v760 = vmul.f32 %v751, 1.442695
    %v761 = vpow.pop %v760
    %v762 = vmul.f32 %v752, 1.442695
    %v763 = vpow.pop %v762
    %v764 = vmul.f32 %v753, 1.442695
    %v765 = vpow.pop %v764
    %v766 = vsel %vm729, %v755, 0.0
    %v767 = vsel %vm729, %v757, 0.0
    %v768 = vadd.f32 %v766, %v767
    %v769 = vsel %vm729, %v759, 0.0
    %v770 = vadd.f32 %v768, %v769
    %v771 = vsel %vm729, %v761, 0.0
    %v772 = vadd.f32 %v770, %v771
    %v773 = vsel %vm729, %v763, 0.0
    %v774 = vadd.f32 %v772, %v773
    %v775 = vsel %vm729, %v765, 0.0
    %v776 = vadd.f32 %v774, %v775
    %v777 = vrot.slane %v776, 4
    %v778 = vadd.f32 %v776, %v777
    %v779 = vrot.slane %v778, 2
    %v780 = vadd.f32 %v778, %v779
    %v781 = vrot.slane %v780, 1
    %v782 = vadd.f32 %v780, %v781
    %v783 = vmax.f32 %v782, 1e-30
    %v784 = vrcp.pop %v783
    %v785 = vmul.f32 %v755, %v784
    %v786 = vmul.f32 %v757, %v784
    %v787 = vmul.f32 %v759, %v784
    %v788 = vmul.f32 %v761, %v784
    %v789 = vmul.f32 %v763, %v784
    %v790 = vmul.f32 %v765, %v784
    %791 = vxpose.xlu0.b32.start [1/16] %v785, 128
    %792 = vxpose.xlu0.b32.cont [2/16] %v786, 128
    %793 = vxpose.xlu0.b32.cont [3/16] %v787, 128
    %794 = vxpose.xlu0.b32.cont [4/16] %v788, 128
    %795 = vxpose.xlu0.b32.cont [5/16] %v789, 128
    %796 = vxpose.xlu0.b32.cont [6/16] %v790, 128
    %797 = vxpose.xlu0.b32.cont [7/16] 0.0, 128
    %798 = vxpose.xlu0.b32.cont [8/16] 0.0, 128
    %799 = vxpose.xlu0.b32.cont [9/16] 0.0, 128
    %800 = vxpose.xlu0.b32.cont [10/16] 0.0, 128
    %801 = vxpose.xlu0.b32.cont [11/16] 0.0, 128
    %802 = vxpose.xlu0.b32.cont [12/16] 0.0, 128
    %803 = vxpose.xlu0.b32.cont [13/16] 0.0, 128
    %804 = vxpose.xlu0.b32.cont [14/16] 0.0, 128
    %805 = vxpose.xlu0.b32.cont [15/16] 0.0, 128
    %806 = vxpose.xlu0.b32.end [16/16] 0.0, 128
    %v807 = vpop.trf.xlu0
    %v808 = vpop.trf.xlu0
    %v809 = vpop.trf.xlu0
    %v810 = vpop.trf.xlu0
    %v811 = vpop.trf.xlu0
    %v812 = vpop.trf.xlu0
    %v813 = vpop.trf.xlu0
    %v814 = vpop.trf.xlu0
    %v815 = vpop.trf.xlu0
    %v816 = vpop.trf.xlu0
    %v817 = vpop.trf.xlu0
    %v818 = vpop.trf.xlu0
    %v819 = vpop.trf.xlu0
    %v820 = vpop.trf.xlu0
    %v821 = vpop.trf.xlu0
    %v822 = vpop.trf.xlu0
    %vm823 = vcmask 392192
    %v825 = vsel %vm823, %v807, 0
    %v828 = vsel %vm823, %v808, 0
    %830 = vmatprep.subr.mxu0 0.0
    %831 = vmatpush1.msra.mxu0 %v563
    %832 = vmatprep.subr.mxu0 0.0
    %833 = vmatpush1.msra.mxu0 %v564
    %834 = vmatprep.subr.mxu0 0.0
    %835 = vmatpush1.msra.mxu0 %v570
    %836 = vmatprep.subr.mxu0 0.0
    %837 = vmatpush1.msra.mxu0 %v572
    %838 = vmatprep.subr.mxu0 0.0
    %839 = vmatpush1.msra.mxu0 %v576
    %840 = vmatprep.subr.mxu0 0.0
    %841 = vmatpush1.msra.mxu0 %v578
    %842 = vmatprep.subr.mxu0 0.0
    %843 = vmatpush1.msra.mxu0 0.0
    %844 = vmatprep.subr.mxu0 0.0
    %845 = vmatpush1.msra.mxu0 0.0
    %846 = vmatprep.subr.mxu0 0.0
    %847 = vmatpush1.msra.mxu0 0.0
    %848 = vmatprep.subr.mxu0 0.0
    %849 = vmatpush1.msra.mxu0 0.0
    %850 = vmatprep.subr.mxu0 0.0
    %851 = vmatpush1.msra.mxu0 0.0
    %852 = vmatprep.subr.mxu0 0.0
    %853 = vmatpush1.msra.mxu0 0.0
    %854 = vmatprep.subr.mxu0 0.0
    %855 = vmatpush1.msra.mxu0 0.0
    %856 = vmatprep.subr.mxu0 0.0
    %857 = vmatpush1.msra.mxu0 0.0
    %858 = vmatprep.subr.mxu0 0.0
    %859 = vmatpush1.msra.mxu0 0.0
    %860 = vmatprep.subr.mxu0 0.0
    %861 = vmatpush1.msra.mxu0 0.0
    %862 = vmatprep.subr.mxu0 0.0
    %863 = vmatpush1.msra.mxu0 0.0
    %864 = vmatprep.subr.mxu0 0.0
    %865 = vmatpush1.msra.mxu0 0.0
    %866 = vmatprep.subr.mxu0 0.0
    %867 = vmatpush1.msra.mxu0 0.0
    %868 = vmatprep.subr.mxu0 0.0
    %869 = vmatpush1.msra.mxu0 0.0
    %870 = vmatprep.subr.mxu0 0.0
    %871 = vmatpush1.msra.mxu0 0.0
    %872 = vmatprep.subr.mxu0 0.0
    %873 = vmatpush1.msra.mxu0 0.0
    %874 = vmatprep.subr.mxu0 0.0
    %875 = vmatpush1.msra.mxu0 0.0
    %876 = vmatprep.subr.mxu0 0.0
    %877 = vmatpush1.msra.mxu0 0.0
    %878 = vmatprep.subr.mxu0 0.0
    %879 = vmatpush1.msra.mxu0 0.0
    %880 = vmatprep.subr.mxu0 0.0
    %881 = vmatpush1.msra.mxu0 0.0
    %882 = vmatprep.subr.mxu0 0.0
    %883 = vmatpush1.msra.mxu0 0.0
    %884 = vmatprep.subr.mxu0 0.0
    %885 = vmatpush1.msra.mxu0 0.0
    %886 = vmatprep.subr.mxu0 0.0
    %887 = vmatpush1.msra.mxu0 0.0
    %888 = vmatprep.subr.mxu0 0.0
    %889 = vmatpush1.msra.mxu0 0.0
    %890 = vmatprep.subr.mxu0 0.0
    %891 = vmatpush1.msra.mxu0 0.0
    %892 = vmatprep.subr.mxu0 0.0
    %893 = vmatpush1.msra.mxu0 0.0
    %894 = vmatprep.mubr.f32.mxu0 0.0
    %895 = vmatmul.mubr.f32.gmra.mrb[0].mxu0 %v825
    %v896 = vpop.f32.mrb[0].mxu0
    %v897 = vadd.f32 0.0, %v896
    %v898 = vpop.f32.mrb[0].mxu0
    %899 = vmatprep.mubr.f32.mxu0 0.0
    %900 = vmatmul.mubr.f32.gmra.mrb[0].mxu0 %v828
    %v901 = vpop.f32.mrb[0].mxu0
    %v902 = vadd.f32 0.0, %v901
    %v903 = vpop.f32.mrb[0].mxu0
    %904 = vdwg.mxu0
    %v905 = vld [vmem:[%s6] sm:$0xff]
    %v906 = vld [vmem:[%s6 + $0x8] sm:$0xff]
    %v907 = vld [vmem:[%s6 + $0x10] sm:$0xff]
    %v908 = vld [vmem:[%s6 + $0x18] sm:$0xff]
    %v910 = vsel %vm621, %v897, 0
    %v913 = vsel %vm621, %v902, 0
    %915 = vmatprep.subr.mxu0 0.0
    %916 = vmatpush1.msra.mxu0 %v905
    %917 = vmatprep.subr.mxu0 0.0
    %918 = vmatpush1.msra.mxu0 %v906
    %919 = vmatprep.subr.mxu0 0.0
    %920 = vmatpush1.msra.mxu0 %v907
    %921 = vmatprep.subr.mxu0 0.0
    %922 = vmatpush1.msra.mxu0 %v908
    %923 = vmatprep.subr.mxu0 0.0
    %924 = vmatpush1.msra.mxu0 0.0
    %925 = vmatprep.subr.mxu0 0.0
    %926 = vmatpush1.msra.mxu0 0.0
    %927 = vmatprep.subr.mxu0 0.0
    %928 = vmatpush1.msra.mxu0 0.0
    %929 = vmatprep.subr.mxu0 0.0
    %930 = vmatpush1.msra.mxu0 0.0
    %931 = vmatprep.subr.mxu0 0.0
    %932 = vmatpush1.msra.mxu0 0.0
    %933 = vmatprep.subr.mxu0 0.0
    %934 = vmatpush1.msra.mxu0 0.0
    %935 = vmatprep.subr.mxu0 0.0
    %936 = vmatpush1.msra.mxu0 0.0
    %937 = vmatprep.subr.mxu0 0.0
    %938 = vmatpush1.msra.mxu0 0.0
    %939 = vmatprep.subr.mxu0 0.0
    %940 = vmatpush1.msra.mxu0 0.0
    %941 = vmatprep.subr.mxu0 0.0
    %942 = vmatpush1.msra.mxu0 0.0
    %943 = vmatprep.subr.mxu0 0.0
    %944 = vmatpush1.msra.mxu0 0.0
    %945 = vmatprep.subr.mxu0 0.0
    %946 = vmatpush1.msra.mxu0 0.0
    %947 = vmatprep.subr.mxu0 0.0
    %948 = vmatpush1.msra.mxu0 0.0
    %949 = vmatprep.subr.mxu0 0.0
    %950 = vmatpush1.msra.mxu0 0.0
    %951 = vmatprep.subr.mxu0 0.0
    %952 = vmatpush1.msra.mxu0 0.0
    %953 = vmatprep.subr.mxu0 0.0
    %954 = vmatpush1.msra.mxu0 0.0
    %955 = vmatprep.subr.mxu0 0.0
    %956 = vmatpush1.msra.mxu0 0.0
    %957 = vmatprep.subr.mxu0 0.0
    %958 = vmatpush1.msra.mxu0 0.0
    %959 = vmatprep.subr.mxu0 0.0
    %960 = vmatpush1.msra.mxu0 0.0
    %961 = vmatprep.subr.mxu0 0.0
    %962 = vmatpush1.msra.mxu0 0.0
    %963 = vmatprep.subr.mxu0 0.0
    %964 = vmatpush1.msra.mxu0 0.0
    %965 = vmatprep.subr.mxu0 0.0
    %966 = vmatpush1.msra.mxu0 0.0
    %967 = vmatprep.subr.mxu0 0.0
    %968 = vmatpush1.msra.mxu0 0.0
    %969 = vmatprep.subr.mxu0 0.0
    %970 = vmatpush1.msra.mxu0 0.0
    %971 = vmatprep.subr.mxu0 0.0
    %972 = vmatpush1.msra.mxu0 0.0
    %973 = vmatprep.subr.mxu0 0.0
    %974 = vmatpush1.msra.mxu0 0.0
    %975 = vmatprep.subr.mxu0 0.0
    %976 = vmatpush1.msra.mxu0 0.0
    %977 = vmatprep.subr.mxu0 0.0
    %978 = vmatpush1.msra.mxu0 0.0
    %979 = vmatprep.mubr.f32.mxu0 0.0
    %980 = vmatmul.mubr.f32.gmra.mrb[0].mxu0 %v910
    %v981 = vpop.f32.mrb[0].mxu0
    %v982 = vadd.f32 0.0, %v981
    %v983 = vpop.f32.mrb[0].mxu0
    %984 = vmatprep.mubr.f32.mxu0 0.0
    %985 = vmatmul.mubr.f32.gmra.mrb[0].mxu0 %v913
    %v986 = vpop.f32.mrb[0].mxu0
    %v987 = vadd.f32 0.0, %v986
    %v988 = vpop.f32.mrb[0].mxu0
    %989 = vdwg.mxu0
    %v990 = vld [vmem:[%s8] sm:$0xff]
    %v991 = vld [vmem:[%s8 + $0x8] sm:$0x3f]
    %v992 = vmul.f32 %v982, %v990
    %v993 = vmul.f32 %v987, %v991
    %vm994 = vcmask 228352
    %v995 = vsel %vm994, %v992, 0.0
    %vm996 = vcmask 226304
    %v997 = vsel %vm996, %v993, 0.0
    %v998 = vadd.f32 %v995, %v997
    %v999 = vrot.slane %v998, 4
    %v1000 = vadd.f32 %v998, %v999
    %v1001 = vrot.slane %v1000, 2
    %v1002 = vadd.f32 %v1000, %v1001
    %v1003 = vrot.slane %v1002, 1
    %v1004 = vadd.f32 %v1002, %v1003
    %v1005 = vld [vmem:[%s7] sm:$0x1]
    %v1006 = vadd.f32 %v1004, %v1005
    %1009 = vrot.lane.b32.xlu0 %v565, 96
    %v1010 = vpop.permute.xlu0 %1009
    %1011 = vrot.lane.b32.xlu0 %v566, 96
    %v1012 = vpop.permute.xlu0 %1011
    %1015 = vrot.lane.b32.xlu0 %v565, 64
    %v1016 = vpop.permute.xlu0 %1015
    %1017 = vrot.lane.b32.xlu0 %v566, 64
    %v1018 = vpop.permute.xlu0 %1017
    %s1021 = scalar_lea.vmem %s5, 48
    %v1022 = vld [vmem:[%s1021] sm:$0xff]
    %v1023 = vld [vmem:[%s1021 + $0x8] sm:$0xff]
    %v1024 = vld [vmem:[%s1021 + $0x10] sm:$0xff]
    %v1025 = vld [vmem:[%s1021 + $0x18] sm:$0xff]
    %v1026 = vld [vmem:[%s1021 + $0x20] sm:$0xff]
    %v1027 = vld [vmem:[%s1021 + $0x28] sm:$0xff]
    %1029 = vset.pattern.permute.xlu0 0
    %1030 = vperm.xlu0 %1029, %v1022
    %v1031 = vpop.permute.xlu0 %1030
    %1034 = vset.pattern.permute.xlu0 0
    %1035 = vperm.xlu0 %1034, %v1023
    %v1036 = vpop.permute.xlu0 %1035
    %1039 = vset.pattern.permute.xlu0 0
    %1040 = vperm.xlu0 %1039, %v1024
    %v1041 = vpop.permute.xlu0 %1040
    %1044 = vset.pattern.permute.xlu0 0
    %1045 = vperm.xlu0 %1044, %v1025
    %v1046 = vpop.permute.xlu0 %1045
    %1049 = vset.pattern.permute.xlu0 0
    %1050 = vperm.xlu0 %1049, %v1026
    %v1051 = vpop.permute.xlu0 %1050
    %1054 = vset.pattern.permute.xlu0 0
    %1055 = vperm.xlu0 %1054, %v1027
    %v1056 = vpop.permute.xlu0 %1055
    %v1058 = vsel %vm621, %v565, 0
    %v1060 = vsel %vm621, %v566, 0
    %v1062 = vsel %vm621, %v1010, 0
    %v1064 = vsel %vm621, %v1012, 0
    %v1066 = vsel %vm621, %v1016, 0
    %v1068 = vsel %vm621, %v1018, 0
    %1070 = vmatprep.subr.mxu0 0.0
    %1071 = vmatpush1.msra.mxu0 %v581
    %1072 = vmatprep.subr.mxu0 0.0
    %1073 = vmatpush1.msra.mxu0 %v582
    %1074 = vmatprep.subr.mxu0 0.0
    %1075 = vmatpush1.msra.mxu0 %v583
    %1076 = vmatprep.subr.mxu0 0.0
    %1077 = vmatpush1.msra.mxu0 %v584
    %1078 = vmatprep.subr.mxu0 0.0
    %1079 = vmatpush1.msra.mxu0 0.0
    %1080 = vmatprep.subr.mxu0 0.0
    %1081 = vmatpush1.msra.mxu0 0.0
    %1082 = vmatprep.subr.mxu0 0.0
    %1083 = vmatpush1.msra.mxu0 0.0
    %1084 = vmatprep.subr.mxu0 0.0
    %1085 = vmatpush1.msra.mxu0 0.0
    %1086 = vmatprep.subr.mxu0 0.0
    %1087 = vmatpush1.msra.mxu0 0.0
    %1088 = vmatprep.subr.mxu0 0.0
    %1089 = vmatpush1.msra.mxu0 0.0
    %1090 = vmatprep.subr.mxu0 0.0
    %1091 = vmatpush1.msra.mxu0 0.0
    %1092 = vmatprep.subr.mxu0 0.0
    %1093 = vmatpush1.msra.mxu0 0.0
    %1094 = vmatprep.subr.mxu0 0.0
    %1095 = vmatpush1.msra.mxu0 0.0
    %1096 = vmatprep.subr.mxu0 0.0
    %1097 = vmatpush1.msra.mxu0 0.0
    %1098 = vmatprep.subr.mxu0 0.0
    %1099 = vmatpush1.msra.mxu0 0.0
    %1100 = vmatprep.subr.mxu0 0.0
    %1101 = vmatpush1.msra.mxu0 0.0
    %1102 = vmatprep.subr.mxu0 0.0
    %1103 = vmatpush1.msra.mxu0 0.0
    %1104 = vmatprep.subr.mxu0 0.0
    %1105 = vmatpush1.msra.mxu0 0.0
    %1106 = vmatprep.subr.mxu0 0.0
    %1107 = vmatpush1.msra.mxu0 0.0
    %1108 = vmatprep.subr.mxu0 0.0
    %1109 = vmatpush1.msra.mxu0 0.0
    %1110 = vmatprep.subr.mxu0 0.0
    %1111 = vmatpush1.msra.mxu0 0.0
    %1112 = vmatprep.subr.mxu0 0.0
    %1113 = vmatpush1.msra.mxu0 0.0
    %1114 = vmatprep.subr.mxu0 0.0
    %1115 = vmatpush1.msra.mxu0 0.0
    %1116 = vmatprep.subr.mxu0 0.0
    %1117 = vmatpush1.msra.mxu0 0.0
    %1118 = vmatprep.subr.mxu0 0.0
    %1119 = vmatpush1.msra.mxu0 0.0
    %1120 = vmatprep.subr.mxu0 0.0
    %1121 = vmatpush1.msra.mxu0 0.0
    %1122 = vmatprep.subr.mxu0 0.0
    %1123 = vmatpush1.msra.mxu0 0.0
    %1124 = vmatprep.subr.mxu0 0.0
    %1125 = vmatpush1.msra.mxu0 0.0
    %1126 = vmatprep.subr.mxu0 0.0
    %1127 = vmatpush1.msra.mxu0 0.0
    %1128 = vmatprep.subr.mxu0 0.0
    %1129 = vmatpush1.msra.mxu0 0.0
    %1130 = vmatprep.subr.mxu0 0.0
    %1131 = vmatpush1.msra.mxu0 0.0
    %1132 = vmatprep.subr.mxu0 0.0
    %1133 = vmatpush1.msra.mxu0 0.0
    %1134 = vmatprep.mubr.f32.mxu0 0.0
    %1135 = vmatmul.mubr.f32.gmra.mrb[0].mxu0 %v1058
    %v1136 = vpop.f32.mrb[0].mxu0
    %v1137 = vadd.f32 %v1031, %v1136
    %v1138 = vpop.f32.mrb[0].mxu0
    %1139 = vmatprep.mubr.f32.mxu0 0.0
    %1140 = vmatmul.mubr.f32.gmra.mrb[0].mxu0 %v1060
    %v1141 = vpop.f32.mrb[0].mxu0
    %v1142 = vadd.f32 %v1036, %v1141
    %v1143 = vpop.f32.mrb[0].mxu0
    %1144 = vmatprep.mubr.f32.mxu0 0.0
    %1145 = vmatmul.mubr.f32.gmra.mrb[0].mxu0 %v1062
    %v1146 = vpop.f32.mrb[0].mxu0
    %v1147 = vadd.f32 %v1041, %v1146
    %v1148 = vpop.f32.mrb[0].mxu0
    %1149 = vmatprep.mubr.f32.mxu0 0.0
    %1150 = vmatmul.mubr.f32.gmra.mrb[0].mxu0 %v1064
    %v1151 = vpop.f32.mrb[0].mxu0
    %v1152 = vadd.f32 %v1046, %v1151
    %v1153 = vpop.f32.mrb[0].mxu0
    %1154 = vmatprep.mubr.f32.mxu0 0.0
    %1155 = vmatmul.mubr.f32.gmra.mrb[0].mxu0 %v1066
    %v1156 = vpop.f32.mrb[0].mxu0
    %v1157 = vadd.f32 %v1051, %v1156
    %v1158 = vpop.f32.mrb[0].mxu0
    %1159 = vmatprep.mubr.f32.mxu0 0.0
    %1160 = vmatmul.mubr.f32.gmra.mrb[0].mxu0 %v1068
    %v1161 = vpop.f32.mrb[0].mxu0
    %v1162 = vadd.f32 %v1056, %v1161
    %v1163 = vpop.f32.mrb[0].mxu0
    %1164 = vdwg.mxu0
    %v1165 = vsel %vm729, %v1137, -inf
    %v1166 = vsel %vm729, %v1142, -inf
    %v1167 = vsel %vm729, %v1147, -inf
    %v1168 = vsel %vm729, %v1152, -inf
    %v1169 = vsel %vm729, %v1157, -inf
    %v1170 = vmax.f32 %v1165, %v1169
    %v1171 = vsel %vm729, %v1162, -inf
    %v1172 = vmax.f32 %v1166, %v1171
    %v1173 = vmax.f32 %v1170, %v1172
    %v1174 = vmax.f32 %v1167, %v1168
    %v1175 = vmax.f32 %v1173, %v1174
    %v1176 = vrot.slane %v1175, 4
    %v1177 = vmax.f32 %v1175, %v1176
    %v1178 = vrot.slane %v1177, 2
    %v1179 = vmax.f32 %v1177, %v1178
    %v1180 = vrot.slane %v1179, 1
    %v1181 = vmax.f32 %v1179, %v1180
    %v1182 = vmax.f32 %v1181, -1e+30
    %v1183 = vsub.f32 %v1137, %v1182
    %v1184 = vsub.f32 %v1142, %v1182
    %v1185 = vsub.f32 %v1147, %v1182
    %v1186 = vsub.f32 %v1152, %v1182
    %v1187 = vsub.f32 %v1157, %v1182
    %v1188 = vsub.f32 %v1162, %v1182
    %v1189 = vmul.f32 %v1183, 1.442695
    %v1190 = vpow.pop %v1189
    %v1191 = vmul.f32 %v1184, 1.442695
    %v1192 = vpow.pop %v1191
    %v1193 = vmul.f32 %v1185, 1.442695
    %v1194 = vpow.pop %v1193
    %v1195 = vmul.f32 %v1186, 1.442695
    %v1196 = vpow.pop %v1195
    %v1197 = vmul.f32 %v1187, 1.442695
    %v1198 = vpow.pop %v1197
    %v1199 = vmul.f32 %v1188, 1.442695
    %v1200 = vpow.pop %v1199
    %v1201 = vsel %vm729, %v1190, 0.0
    %v1202 = vsel %vm729, %v1192, 0.0
    %v1203 = vadd.f32 %v1201, %v1202
    %v1204 = vsel %vm729, %v1194, 0.0
    %v1205 = vadd.f32 %v1203, %v1204
    %v1206 = vsel %vm729, %v1196, 0.0
    %v1207 = vadd.f32 %v1205, %v1206
    %v1208 = vsel %vm729, %v1198, 0.0
    %v1209 = vadd.f32 %v1207, %v1208
    %v1210 = vsel %vm729, %v1200, 0.0
    %v1211 = vadd.f32 %v1209, %v1210
    %v1212 = vrot.slane %v1211, 4
    %v1213 = vadd.f32 %v1211, %v1212
    %v1214 = vrot.slane %v1213, 2
    %v1215 = vadd.f32 %v1213, %v1214
    %v1216 = vrot.slane %v1215, 1
    %v1217 = vadd.f32 %v1215, %v1216
    %v1218 = vmax.f32 %v1217, 1e-30
    %v1219 = vrcp.pop %v1218
    %v1220 = vmul.f32 %v1190, %v1219
    %v1221 = vmul.f32 %v1192, %v1219
    %v1222 = vmul.f32 %v1194, %v1219
    %v1223 = vmul.f32 %v1196, %v1219
    %v1224 = vmul.f32 %v1198, %v1219
    %v1225 = vmul.f32 %v1200, %v1219
    %1226 = vxpose.xlu0.b32.start [1/16] %v1220, 128
    %1227 = vxpose.xlu0.b32.cont [2/16] %v1221, 128
    %1228 = vxpose.xlu0.b32.cont [3/16] %v1222, 128
    %1229 = vxpose.xlu0.b32.cont [4/16] %v1223, 128
    %1230 = vxpose.xlu0.b32.cont [5/16] %v1224, 128
    %1231 = vxpose.xlu0.b32.cont [6/16] %v1225, 128
    %1232 = vxpose.xlu0.b32.cont [7/16] 0.0, 128
    %1233 = vxpose.xlu0.b32.cont [8/16] 0.0, 128
    %1234 = vxpose.xlu0.b32.cont [9/16] 0.0, 128
    %1235 = vxpose.xlu0.b32.cont [10/16] 0.0, 128
    %1236 = vxpose.xlu0.b32.cont [11/16] 0.0, 128
    %1237 = vxpose.xlu0.b32.cont [12/16] 0.0, 128
    %1238 = vxpose.xlu0.b32.cont [13/16] 0.0, 128
    %1239 = vxpose.xlu0.b32.cont [14/16] 0.0, 128
    %1240 = vxpose.xlu0.b32.cont [15/16] 0.0, 128
    %1241 = vxpose.xlu0.b32.end [16/16] 0.0, 128
    %v1242 = vpop.trf.xlu0
    %v1243 = vpop.trf.xlu0
    %v1244 = vpop.trf.xlu0
    %v1245 = vpop.trf.xlu0
    %v1246 = vpop.trf.xlu0
    %v1247 = vpop.trf.xlu0
    %v1248 = vpop.trf.xlu0
    %v1249 = vpop.trf.xlu0
    %v1250 = vpop.trf.xlu0
    %v1251 = vpop.trf.xlu0
    %v1252 = vpop.trf.xlu0
    %v1253 = vpop.trf.xlu0
    %v1254 = vpop.trf.xlu0
    %v1255 = vpop.trf.xlu0
    %v1256 = vpop.trf.xlu0
    %v1257 = vpop.trf.xlu0
    %v1259 = vsel %vm823, %v1242, 0
    %v1262 = vsel %vm823, %v1243, 0
    %1264 = vmatprep.subr.mxu0 0.0
    %1265 = vmatpush1.msra.mxu0 %v565
    %1266 = vmatprep.subr.mxu0 0.0
    %1267 = vmatpush1.msra.mxu0 %v566
    %1268 = vmatprep.subr.mxu0 0.0
    %1269 = vmatpush1.msra.mxu0 %v1010
    %1270 = vmatprep.subr.mxu0 0.0
    %1271 = vmatpush1.msra.mxu0 %v1012
    %1272 = vmatprep.subr.mxu0 0.0
    %1273 = vmatpush1.msra.mxu0 %v1016
    %1274 = vmatprep.subr.mxu0 0.0
    %1275 = vmatpush1.msra.mxu0 %v1018
    %1276 = vmatprep.subr.mxu0 0.0
    %1277 = vmatpush1.msra.mxu0 0.0
    %1278 = vmatprep.subr.mxu0 0.0
    %1279 = vmatpush1.msra.mxu0 0.0
    %1280 = vmatprep.subr.mxu0 0.0
    %1281 = vmatpush1.msra.mxu0 0.0
    %1282 = vmatprep.subr.mxu0 0.0
    %1283 = vmatpush1.msra.mxu0 0.0
    %1284 = vmatprep.subr.mxu0 0.0
    %1285 = vmatpush1.msra.mxu0 0.0
    %1286 = vmatprep.subr.mxu0 0.0
    %1287 = vmatpush1.msra.mxu0 0.0
    %1288 = vmatprep.subr.mxu0 0.0
    %1289 = vmatpush1.msra.mxu0 0.0
    %1290 = vmatprep.subr.mxu0 0.0
    %1291 = vmatpush1.msra.mxu0 0.0
    %1292 = vmatprep.subr.mxu0 0.0
    %1293 = vmatpush1.msra.mxu0 0.0
    %1294 = vmatprep.subr.mxu0 0.0
    %1295 = vmatpush1.msra.mxu0 0.0
    %1296 = vmatprep.subr.mxu0 0.0
    %1297 = vmatpush1.msra.mxu0 0.0
    %1298 = vmatprep.subr.mxu0 0.0
    %1299 = vmatpush1.msra.mxu0 0.0
    %1300 = vmatprep.subr.mxu0 0.0
    %1301 = vmatpush1.msra.mxu0 0.0
    %1302 = vmatprep.subr.mxu0 0.0
    %1303 = vmatpush1.msra.mxu0 0.0
    %1304 = vmatprep.subr.mxu0 0.0
    %1305 = vmatpush1.msra.mxu0 0.0
    %1306 = vmatprep.subr.mxu0 0.0
    %1307 = vmatpush1.msra.mxu0 0.0
    %1308 = vmatprep.subr.mxu0 0.0
    %1309 = vmatpush1.msra.mxu0 0.0
    %1310 = vmatprep.subr.mxu0 0.0
    %1311 = vmatpush1.msra.mxu0 0.0
    %1312 = vmatprep.subr.mxu0 0.0
    %1313 = vmatpush1.msra.mxu0 0.0
    %1314 = vmatprep.subr.mxu0 0.0
    %1315 = vmatpush1.msra.mxu0 0.0
    %1316 = vmatprep.subr.mxu0 0.0
    %1317 = vmatpush1.msra.mxu0 0.0
    %1318 = vmatprep.subr.mxu0 0.0
    %1319 = vmatpush1.msra.mxu0 0.0
    %1320 = vmatprep.subr.mxu0 0.0
    %1321 = vmatpush1.msra.mxu0 0.0
    %1322 = vmatprep.subr.mxu0 0.0
    %1323 = vmatpush1.msra.mxu0 0.0
    %1324 = vmatprep.subr.mxu0 0.0
    %1325 = vmatpush1.msra.mxu0 0.0
    %1326 = vmatprep.subr.mxu0 0.0
    %1327 = vmatpush1.msra.mxu0 0.0
    %1328 = vmatprep.mubr.f32.mxu0 0.0
    %1329 = vmatmul.mubr.f32.gmra.mrb[0].mxu0 %v1259
    %v1330 = vpop.f32.mrb[0].mxu0
    %v1331 = vadd.f32 0.0, %v1330
    %v1332 = vpop.f32.mrb[0].mxu0
    %1333 = vmatprep.mubr.f32.mxu0 0.0
    %1334 = vmatmul.mubr.f32.gmra.mrb[0].mxu0 %v1262
    %v1335 = vpop.f32.mrb[0].mxu0
    %v1336 = vadd.f32 0.0, %v1335
    %v1337 = vpop.f32.mrb[0].mxu0
    %1338 = vdwg.mxu0
    %v1340 = vsel %vm621, %v1331, 0
    %v1343 = vsel %vm621, %v1336, 0
    %1345 = vmatprep.subr.mxu0 0.0
    %1346 = vmatpush1.msra.mxu0 %v905
    %1347 = vmatprep.subr.mxu0 0.0
    %1348 = vmatpush1.msra.mxu0 %v906
    %1349 = vmatprep.subr.mxu0 0.0
    %1350 = vmatpush1.msra.mxu0 %v907
    %1351 = vmatprep.subr.mxu0 0.0
    %1352 = vmatpush1.msra.mxu0 %v908
    %1353 = vmatprep.subr.mxu0 0.0
    %1354 = vmatpush1.msra.mxu0 0.0
    %1355 = vmatprep.subr.mxu0 0.0
    %1356 = vmatpush1.msra.mxu0 0.0
    %1357 = vmatprep.subr.mxu0 0.0
    %1358 = vmatpush1.msra.mxu0 0.0
    %1359 = vmatprep.subr.mxu0 0.0
    %1360 = vmatpush1.msra.mxu0 0.0
    %1361 = vmatprep.subr.mxu0 0.0
    %1362 = vmatpush1.msra.mxu0 0.0
    %1363 = vmatprep.subr.mxu0 0.0
    %1364 = vmatpush1.msra.mxu0 0.0
    %1365 = vmatprep.subr.mxu0 0.0
    %1366 = vmatpush1.msra.mxu0 0.0
    %1367 = vmatprep.subr.mxu0 0.0
    %1368 = vmatpush1.msra.mxu0 0.0
    %1369 = vmatprep.subr.mxu0 0.0
    %1370 = vmatpush1.msra.mxu0 0.0
    %1371 = vmatprep.subr.mxu0 0.0
    %1372 = vmatpush1.msra.mxu0 0.0
    %1373 = vmatprep.subr.mxu0 0.0
    %1374 = vmatpush1.msra.mxu0 0.0
    %1375 = vmatprep.subr.mxu0 0.0
    %1376 = vmatpush1.msra.mxu0 0.0
    %1377 = vmatprep.subr.mxu0 0.0
    %1378 = vmatpush1.msra.mxu0 0.0
    %1379 = vmatprep.subr.mxu0 0.0
    %1380 = vmatpush1.msra.mxu0 0.0
    %1381 = vmatprep.subr.mxu0 0.0
    %1382 = vmatpush1.msra.mxu0 0.0
    %1383 = vmatprep.subr.mxu0 0.0
    %1384 = vmatpush1.msra.mxu0 0.0
    %1385 = vmatprep.subr.mxu0 0.0
    %1386 = vmatpush1.msra.mxu0 0.0
    %1387 = vmatprep.subr.mxu0 0.0
    %1388 = vmatpush1.msra.mxu0 0.0
    %1389 = vmatprep.subr.mxu0 0.0
    %1390 = vmatpush1.msra.mxu0 0.0
    %1391 = vmatprep.subr.mxu0 0.0
    %1392 = vmatpush1.msra.mxu0 0.0
    %1393 = vmatprep.subr.mxu0 0.0
    %1394 = vmatpush1.msra.mxu0 0.0
    %1395 = vmatprep.subr.mxu0 0.0
    %1396 = vmatpush1.msra.mxu0 0.0
    %1397 = vmatprep.subr.mxu0 0.0
    %1398 = vmatpush1.msra.mxu0 0.0
    %1399 = vmatprep.subr.mxu0 0.0
    %1400 = vmatpush1.msra.mxu0 0.0
    %1401 = vmatprep.subr.mxu0 0.0
    %1402 = vmatpush1.msra.mxu0 0.0
    %1403 = vmatprep.subr.mxu0 0.0
    %1404 = vmatpush1.msra.mxu0 0.0
    %1405 = vmatprep.subr.mxu0 0.0
    %1406 = vmatpush1.msra.mxu0 0.0
    %1407 = vmatprep.subr.mxu0 0.0
    %1408 = vmatpush1.msra.mxu0 0.0
    %1409 = vmatprep.mubr.f32.mxu0 0.0
    %1410 = vmatmul.mubr.f32.gmra.mrb[0].mxu0 %v1340
    %v1411 = vpop.f32.mrb[0].mxu0
    %v1412 = vadd.f32 0.0, %v1411
    %v1413 = vpop.f32.mrb[0].mxu0
    %1414 = vmatprep.mubr.f32.mxu0 0.0
    %1415 = vmatmul.mubr.f32.gmra.mrb[0].mxu0 %v1343
    %v1416 = vpop.f32.mrb[0].mxu0
    %v1417 = vadd.f32 0.0, %v1416
    %v1418 = vpop.f32.mrb[0].mxu0
    %1419 = vdwg.mxu0
    %v1420 = vmul.f32 %v1412, %v990
    %v1421 = vmul.f32 %v1417, %v991
    %v1422 = vsel %vm994, %v1420, 0.0
    %v1423 = vsel %vm996, %v1421, 0.0
    %v1424 = vadd.f32 %v1422, %v1423
    %v1425 = vrot.slane %v1424, 4
    %v1426 = vadd.f32 %v1424, %v1425
    %v1427 = vrot.slane %v1426, 2
    %v1428 = vadd.f32 %v1426, %v1427
    %v1429 = vrot.slane %v1428, 1
    %v1430 = vadd.f32 %v1428, %v1429
    %v1431 = vadd.f32 %v1430, %v1005
    %v1433 = vrot.slane %v1431, 7
    %vm1435 = vcmask 1040384
    %v1436 = vsel %vm1435, %v1006, %v1433
    %vm1437 = vcmask 222208
    %1438 = vst.msk [vmem:[#allocation2] sm:$0x3] %vm1437, %v1436
    // Predicated region
    $region38: #{tpu_custom_call.1} parent=1 // pred_check
      _
    $region39: #{tpu_custom_call.1} parent=1 // pred_check_branch
      %1440 = sbr.rel (0) target = $region41
    $region40: #{tpu_custom_call.1} parent=1 // pred_region
      %s1442 = ssub.s32 32, 32
      %1443 = vsyncadd [#allocation3], %s1442
      %s1445 = sshll.u32 [#allocation2], 4
      %s1446 = int_to_ptr.vmem [resolvable:$true] %s1445
      %1448 = dma.vmem_to_hbm [thread:$0]  %s1446, 32, %s9, [#allocation3]
    $region41: #{tpu_custom_call.1} parent=1 // pred_fallthru
      _
    // Predicated region
    $region42: #{tpu_custom_call.1} parent=1 // pred_check
      _
    $region43: #{tpu_custom_call.1} parent=1 // pred_check_branch
      %1450 = sbr.rel (0) target = $region45
    $region44: #{tpu_custom_call.1} parent=1 // pred_region
      %1451 = dma.done [#allocation3], 32
    $region45: #{tpu_custom_call.1} parent=1 // pred_fallthru
      _
    %1452 = vsyncpa [#allocation3], 1

</llo_original>
